<compile_context>
chip_gen: v7x
topology: tpu7x:2x2x1
jax: 0.10.0
libtpu: 0.0.40
codegen_flags: <defaults>
</compile_context>

<pallas_src>
import jax
import jax.numpy as jnp
from jax.experimental import pallas as pl
from jax.experimental.pallas import tpu as pltpu

# ---------------- model hyper-parameters (small, deterministic) ----------------
INPUT_DIM = 3
OUTPUT_DIM = 4
ENCODING_DIM = 32            # encoding_dim (sin half = 16, cos half = 16)
HIDDEN_LAYERS = [32, 32]     # FNN: ENCODING_DIM -> 32 (tanh) -> 32 (linear)
SIGMAS = [1.0, 10.0]
N_SIGMAS = len(SIGMAS)
H1 = HIDDEN_LAYERS[0]
H_LAST = HIDDEN_LAYERS[-1]
E2 = ENCODING_DIM // 2

TB = 256                     # batch tile on the lane axis (multiple of 128)


def _msffnn_kernel(x_ref, bt_ref, w1s_ref, w1c_ref, b1_ref,
                   w2_ref, b2_ref, wft_ref, bf_ref, o_ref):
    """One batch tile, transposed layout: features on sublanes, batch on lanes."""
    x = x_ref[...]                                               # (IN, TB)

    # Fused Fourier encoding for all sigmas: z = [B_1^T; ...; B_S^T] @ x
    z = jnp.dot(bt_ref[...], x, preferred_element_type=jnp.float32)   # (NS*E2, TB)
    s = jnp.sin(z)
    c = jnp.cos(z)

    # Shared FNN applied to all sigmas at once via block-diagonal weights.
    # concat([sin, cos]) is folded into two accumulating matmuls.
    h = jnp.tanh(jnp.dot(w1s_ref[...], s, preferred_element_type=jnp.float32)
                 + jnp.dot(w1c_ref[...], c, preferred_element_type=jnp.float32)
                 + b1_ref[...])                                  # (NS*H1, TB)
    dec = (jnp.dot(w2_ref[...], h, preferred_element_type=jnp.float32)
           + b2_ref[...])                                        # (NS*H_LAST, TB)

    # Folded concat + final Linear: out = Wf^T @ [dec_1; ...; dec_S] + bf.
    o_ref[...] = (jnp.dot(wft_ref[...], dec, preferred_element_type=jnp.float32)
                  + bf_ref[...])                                 # (OUT, TB)


def multiscale_ffnn(x, B, W1, b1, W2, b2, Wf, bf, *, tb=TB):
    """x: (N, INPUT_DIM) -> (N, OUTPUT_DIM). Parameters in natural math layout."""
    n = x.shape[0]
    n_pad = -(-n // tb) * tb

    # ---- layout preparation (done in plain XLA, once per call) ----
    xT = jnp.pad(x.astype(jnp.float32).T, ((0, 0), (0, n_pad - n)))      # (IN, n_pad)
    Bt = jnp.transpose(B, (0, 2, 1)).reshape(N_SIGMAS * E2, INPUT_DIM)   # (NS*E2, IN)

    eye = jnp.eye(N_SIGMAS, dtype=jnp.float32)
    W1sT = jnp.kron(eye, W1[:E2].T)                     # (NS*H1, NS*E2)  sin block
    W1cT = jnp.kron(eye, W1[E2:].T)                     # (NS*H1, NS*E2)  cos block
    W2T = jnp.kron(eye, W2.T)                           # (NS*H_LAST, NS*H1)
    b1c = jnp.tile(b1.reshape(-1), N_SIGMAS).reshape(-1, 1)   # (NS*H1, 1)
    b2c = jnp.tile(b2.reshape(-1), N_SIGMAS).reshape(-1, 1)   # (NS*H_LAST, 1)
    WfT = Wf.reshape(N_SIGMAS * H_LAST, OUTPUT_DIM).T         # (OUT, NS*H_LAST)
    bfc = bf.reshape(-1, 1)                                    # (OUT, 1)

    def full(a):
        return pl.BlockSpec(a.shape, lambda i: (0,) * a.ndim)

    grid = (n_pad // tb,)

    outT = pl.pallas_call(
        _msffnn_kernel,
        out_shape=jax.ShapeDtypeStruct((OUTPUT_DIM, n_pad), jnp.float32),
        grid_spec=pltpu.PrefetchScalarGridSpec(
            num_scalar_prefetch=0,
            grid=grid,
            in_specs=[
                pl.BlockSpec((INPUT_DIM, tb), lambda i: (0, i)),   # xT (batch-tiled on lanes)
                full(Bt),                                          # stacked Fourier B^T
                full(W1sT), full(W1cT), full(b1c),                 # FNN layer 1 (sin/cos split)
                full(W2T), full(b2c),                              # FNN layer 2
                full(WfT), full(bfc),                              # final Linear
            ],
            out_specs=pl.BlockSpec((OUTPUT_DIM, tb), lambda i: (0, i)),
        ),
        compiler_params=pltpu.CompilerParams(
            dimension_semantics=("parallel",)),
    )(xT, Bt, W1sT, W1cT, b1c, W2T, b2c, WfT, bfc)

    return outT[:, :n].T                                           # (N, OUT)


def reference(x, B, W1, b1, W2, b2, Wf, bf):
    outs = []
    for s in range(N_SIGMAS):
        z = x @ B[s]
        enc = jnp.concatenate([jnp.sin(z), jnp.cos(z)], axis=1)
        h = jnp.tanh(enc @ W1 + b1)
        outs.append(h @ W2 + b2)
    cat = jnp.concatenate(outs, axis=1)
    return cat @ Wf.reshape(N_SIGMAS * H_LAST, OUTPUT_DIM) + bf


if __name__ == "__main__":
    key = jax.random.PRNGKey(0)
    ks = jax.random.split(key, 8)

    BATCH = 1000   # deliberately not a multiple of TB to exercise padding path

    x = jax.random.normal(ks[0], (BATCH, INPUT_DIM), jnp.float32)

    # FourierEncoding B matrices: standard normal scaled by sigma (non-trainable).
    B = jax.random.normal(ks[1], (N_SIGMAS, INPUT_DIM, E2), jnp.float32)
    B = B * jnp.asarray(SIGMAS, jnp.float32)[:, None, None]

    # Shared FNN parameters (deterministic synthetic init).
    W1 = 0.1 * jax.random.normal(ks[2], (ENCODING_DIM, H1), jnp.float32)
    b1 = 0.1 * jax.random.normal(ks[3], (H1,), jnp.float32)
    W2 = 0.1 * jax.random.normal(ks[4], (H1, H_LAST), jnp.float32)
    b2 = 0.1 * jax.random.normal(ks[5], (H_LAST,), jnp.float32)

    # Final Linear(len(sigmas)*H_LAST -> OUTPUT_DIM), stored per-sigma slab.
    Wf = 0.1 * jax.random.normal(ks[6], (N_SIGMAS, H_LAST, OUTPUT_DIM), jnp.float32)
    bf = 0.1 * jax.random.normal(ks[7], (OUTPUT_DIM,), jnp.float32)

    out = multiscale_ffnn(x, B, W1, b1, W2, b2, Wf, bf)
    out = jax.block_until_ready(out)

    ref = reference(x, B, W1, b1, W2, b2, Wf, bf)
    assert out.shape == (BATCH, OUTPUT_DIM)
    assert jnp.allclose(out, ref, rtol=1e-3, atol=1e-3), "mismatch vs reference"

    print("KERNEL_OK")
</pallas_src>

<mosaic_0001>
module attributes {stable_mosaic.version = 11 : i64} {
  func.func @_msffnn_kernel(%arg0: i32, %arg1: memref<3x256xf32, #tpu.memory_space<vmem>>, %arg2: memref<32x3xf32, #tpu.memory_space<vmem>>, %arg3: memref<64x32xf32, #tpu.memory_space<vmem>>, %arg4: memref<64x32xf32, #tpu.memory_space<vmem>>, %arg5: memref<64x1xf32, #tpu.memory_space<vmem>>, %arg6: memref<64x64xf32, #tpu.memory_space<vmem>>, %arg7: memref<64x1xf32, #tpu.memory_space<vmem>>, %arg8: memref<4x64xf32, #tpu.memory_space<vmem>>, %arg9: memref<4x1xf32, #tpu.memory_space<vmem>>, %arg10: memref<4x256xf32, #tpu.memory_space<vmem>>) attributes {dimension_semantics = [#tpu.dimension_semantics<parallel>], iteration_bounds = array<i64: 4>, scalar_prefetch = 0 : i64, scratch_operands = 0 : i64, tpu.core_type = #tpu.core_type<tc>, window_params = [{transform_indices = @transform_0, window_bounds = array<i64: 3, 256>}, {pipeline_mode = #tpu.pipeline_mode<synchronous>, transform_indices = @transform_1, window_bounds = array<i64: 32, 3>}, {pipeline_mode = #tpu.pipeline_mode<synchronous>, transform_indices = @transform_2, window_bounds = array<i64: 64, 32>}, {pipeline_mode = #tpu.pipeline_mode<synchronous>, transform_indices = @transform_3, window_bounds = array<i64: 64, 32>}, {pipeline_mode = #tpu.pipeline_mode<synchronous>, transform_indices = @transform_4, window_bounds = array<i64: 64, 1>}, {pipeline_mode = #tpu.pipeline_mode<synchronous>, transform_indices = @transform_5, window_bounds = array<i64: 64, 64>}, {pipeline_mode = #tpu.pipeline_mode<synchronous>, transform_indices = @transform_6, window_bounds = array<i64: 64, 1>}, {pipeline_mode = #tpu.pipeline_mode<synchronous>, transform_indices = @transform_7, window_bounds = array<i64: 4, 64>}, {pipeline_mode = #tpu.pipeline_mode<synchronous>, transform_indices = @transform_8, window_bounds = array<i64: 4, 1>}, {transform_indices = @transform_9, window_bounds = array<i64: 4, 256>}]} {
    %c0 = arith.constant 0 : index
    %c0_0 = arith.constant 0 : index
    %0 = vector.load %arg1[%c0, %c0_0] : memref<3x256xf32, #tpu.memory_space<vmem>>, vector<3x256xf32>
    %c0_1 = arith.constant 0 : index
    %c0_2 = arith.constant 0 : index
    %1 = vector.load %arg2[%c0_1, %c0_2] : memref<32x3xf32, #tpu.memory_space<vmem>>, vector<32x3xf32>
    %cst = arith.constant dense<0.000000e+00> : vector<32x256xf32>
    %2 = tpu.matmul %1, %0, %cst {dimension_numbers = #tpu.dot_dimension_numbers<[1], [0], [0], [1], [0, 0, 1, 1], [], []>} : vector<32x3xf32>, vector<3x256xf32>, vector<32x256xf32> -> vector<32x256xf32>
    %3 = math.sin %2 : vector<32x256xf32>
    %4 = math.cos %2 : vector<32x256xf32>
    %c0_3 = arith.constant 0 : index
    %c0_4 = arith.constant 0 : index
    %5 = vector.load %arg3[%c0_3, %c0_4] : memref<64x32xf32, #tpu.memory_space<vmem>>, vector<64x32xf32>
    %cst_5 = arith.constant dense<0.000000e+00> : vector<64x256xf32>
    %6 = tpu.matmul %5, %3, %cst_5 {dimension_numbers = #tpu.dot_dimension_numbers<[1], [0], [0], [1], [0, 0, 1, 1], [], []>} : vector<64x32xf32>, vector<32x256xf32>, vector<64x256xf32> -> vector<64x256xf32>
    %c0_6 = arith.constant 0 : index
    %c0_7 = arith.constant 0 : index
    %7 = vector.load %arg4[%c0_6, %c0_7] : memref<64x32xf32, #tpu.memory_space<vmem>>, vector<64x32xf32>
    %cst_8 = arith.constant dense<0.000000e+00> : vector<64x256xf32>
    %8 = tpu.matmul %7, %4, %cst_8 {dimension_numbers = #tpu.dot_dimension_numbers<[1], [0], [0], [1], [0, 0, 1, 1], [], []>} : vector<64x32xf32>, vector<32x256xf32>, vector<64x256xf32> -> vector<64x256xf32>
    %9 = arith.addf %6, %8 : vector<64x256xf32>
    %c0_9 = arith.constant 0 : index
    %c0_10 = arith.constant 0 : index
    %10 = vector.load %arg5[%c0_9, %c0_10] : memref<64x1xf32, #tpu.memory_space<vmem>>, vector<64x1xf32>
    %11 = vector.broadcast %10 : vector<64x1xf32> to vector<64x256xf32>
    %12 = arith.addf %9, %11 : vector<64x256xf32>
    %13 = math.tanh %12 : vector<64x256xf32>
    %c0_11 = arith.constant 0 : index
    %c0_12 = arith.constant 0 : index
    %14 = vector.load %arg6[%c0_11, %c0_12] : memref<64x64xf32, #tpu.memory_space<vmem>>, vector<64x64xf32>
    %cst_13 = arith.constant dense<0.000000e+00> : vector<64x256xf32>
    %15 = tpu.matmul %14, %13, %cst_13 {dimension_numbers = #tpu.dot_dimension_numbers<[1], [0], [0], [1], [0, 0, 1, 1], [], []>} : vector<64x64xf32>, vector<64x256xf32>, vector<64x256xf32> -> vector<64x256xf32>
    %c0_14 = arith.constant 0 : index
    %c0_15 = arith.constant 0 : index
    %16 = vector.load %arg7[%c0_14, %c0_15] : memref<64x1xf32, #tpu.memory_space<vmem>>, vector<64x1xf32>
    %17 = vector.broadcast %16 : vector<64x1xf32> to vector<64x256xf32>
    %18 = arith.addf %15, %17 : vector<64x256xf32>
    %c0_16 = arith.constant 0 : index
    %c0_17 = arith.constant 0 : index
    %19 = vector.load %arg8[%c0_16, %c0_17] : memref<4x64xf32, #tpu.memory_space<vmem>>, vector<4x64xf32>
    %cst_18 = arith.constant dense<0.000000e+00> : vector<4x256xf32>
    %20 = tpu.matmul %19, %18, %cst_18 {dimension_numbers = #tpu.dot_dimension_numbers<[1], [0], [0], [1], [0, 0, 1, 1], [], []>} : vector<4x64xf32>, vector<64x256xf32>, vector<4x256xf32> -> vector<4x256xf32>
    %c0_19 = arith.constant 0 : index
    %c0_20 = arith.constant 0 : index
    %21 = vector.load %arg9[%c0_19, %c0_20] : memref<4x1xf32, #tpu.memory_space<vmem>>, vector<4x1xf32>
    %22 = vector.broadcast %21 : vector<4x1xf32> to vector<4x256xf32>
    %23 = arith.addf %20, %22 : vector<4x256xf32>
    %c0_21 = arith.constant 0 : index
    %c0_22 = arith.constant 0 : index
    %24 = vector.load %arg10[%c0_21, %c0_22] : memref<4x256xf32, #tpu.memory_space<vmem>>, vector<4x256xf32>
    tpu.vector_store %arg10[%c0_21, %c0_22], %23 {strides = array<i32>} : memref<4x256xf32, #tpu.memory_space<vmem>>, vector<4x256xf32>,
    return
  }
  func.func @transform_0(%arg0: i32) -> (i32, i32) {
    %c0_i32 = arith.constant 0 : i32
    %c0_i32_0 = arith.constant 0 : i32
    return %c0_i32, %arg0 : i32, i32
  }
  func.func @transform_1(%arg0: i32) -> (i32, i32) {
    %c0_i32 = arith.constant 0 : i32
    %c0_i32_0 = arith.constant 0 : i32
    %c0_i32_1 = arith.constant 0 : i32
    return %c0_i32, %c0_i32_0 : i32, i32
  }
  func.func @transform_2(%arg0: i32) -> (i32, i32) {
    %c0_i32 = arith.constant 0 : i32
    %c0_i32_0 = arith.constant 0 : i32
    %c0_i32_1 = arith.constant 0 : i32
    return %c0_i32, %c0_i32_0 : i32, i32
  }
  func.func @transform_3(%arg0: i32) -> (i32, i32) {
    %c0_i32 = arith.constant 0 : i32
    %c0_i32_0 = arith.constant 0 : i32
    %c0_i32_1 = arith.constant 0 : i32
    return %c0_i32, %c0_i32_0 : i32, i32
  }
  func.func @transform_4(%arg0: i32) -> (i32, i32) {
    %c0_i32 = arith.constant 0 : i32
    %c0_i32_0 = arith.constant 0 : i32
    %c0_i32_1 = arith.constant 0 : i32
    return %c0_i32, %c0_i32_0 : i32, i32
  }
  func.func @transform_5(%arg0: i32) -> (i32, i32) {
    %c0_i32 = arith.constant 0 : i32
    %c0_i32_0 = arith.constant 0 : i32
    %c0_i32_1 = arith.constant 0 : i32
    return %c0_i32, %c0_i32_0 : i32, i32
  }
  func.func @transform_6(%arg0: i32) -> (i32, i32) {
    %c0_i32 = arith.constant 0 : i32
    %c0_i32_0 = arith.constant 0 : i32
    %c0_i32_1 = arith.constant 0 : i32
    return %c0_i32, %c0_i32_0 : i32, i32
  }
  func.func @transform_7(%arg0: i32) -> (i32, i32) {
    %c0_i32 = arith.constant 0 : i32
    %c0_i32_0 = arith.constant 0 : i32
    %c0_i32_1 = arith.constant 0 : i32
    return %c0_i32, %c0_i32_0 : i32, i32
  }
  func.func @transform_8(%arg0: i32) -> (i32, i32) {
    %c0_i32 = arith.constant 0 : i32
    %c0_i32_0 = arith.constant 0 : i32
    %c0_i32_1 = arith.constant 0 : i32
    return %c0_i32, %c0_i32_0 : i32, i32
  }
  func.func @transform_9(%arg0: i32) -> (i32, i32) {
    %c0_i32 = arith.constant 0 : i32
    %c0_i32_0 = arith.constant 0 : i32
    return %c0_i32, %arg0 : i32, i32
  }
}

</mosaic_0001>

<llo_original>
// kernel: tpu_custom_call.1
$region0: #{tpu_custom_call.1}
  #allocation0 [shape = 'u32[]', space=smem, size = 0x4, offset = 0x4, fixed_abs, tag = 'smem constant byte address 0x4 - core index']
  #allocation1 [shape = 'u32[144,128]{1,0:T(1,128)}', space=vmem, size = 0x12000, scoped, tag = 'internal scratch']
  %s0 = inlined_call_operand.vmem [shape: f32[3,1024], index: 0, kind: input, shape index: {}]
  %s1 = inlined_call_operand.vmem [shape: f32[32,3], index: 1, kind: input, shape index: {}]
  %s2 = inlined_call_operand.vmem [shape: f32[64,32], index: 2, kind: input, shape index: {}]
  %s3 = inlined_call_operand.vmem [shape: f32[64,32], index: 3, kind: input, shape index: {}]
  %s4 = inlined_call_operand.vmem [shape: f32[64,1], index: 4, kind: input, shape index: {}]
  %s5 = inlined_call_operand.vmem [shape: f32[64,64], index: 5, kind: input, shape index: {}]
  %s6 = inlined_call_operand.vmem [shape: f32[64,1], index: 6, kind: input, shape index: {}]
  %s7 = inlined_call_operand.vmem [shape: f32[4,64], index: 7, kind: input, shape index: {}]
  %s8 = inlined_call_operand.vmem [shape: f32[4,1], index: 8, kind: input, shape index: {}]
  %s9 = inlined_call_operand.hbm [shape: f32[4,1024], index: 9, kind: output, shape index: {}]
  %s10 = sld [smem:[#allocation0]]
  $region69: #{tpu_custom_call.1} parent=0
    _
  %s12 = ssub.s32 1, %s10
  %s13 = scalar_select 0, %s12, %s10
  $region1: #{tpu_custom_call.1} parent=0
    #allocation2 [shape = 'u8[8192]{0}', space=vmem, size = 0x2000, scoped, tag = 'output window, operand 0']
    #allocation3 [shape = 's32[2]{0}', space=sflag, size = 0x8, scoped, tag = 'scoped memory for tpu_custom_call.1']
    %14 = vsyncpa [#allocation3], 0
    %s15 = scalar_lea.sflag [#allocation3], 1
    %16 = vsyncpa %s15, 0
    loop: start=0, step=1, limit=6
    $region2: #{tpu_custom_call.1} parent=1 // loop_pre_header
      _
    $region3: #{tpu_custom_call.1} parent=1 // loop_header
      %s18 = sphi 0, %s22
      %p19 = scmp.ge.s32.totalorder %s18, 6
      %s28 = sphi 0, %s30
      %s31 = sphi 0, %s28
      %s32 = sphi 0, %s31
      %s48 = sphi 0, %s32
      %s52 = sphi 0, %s52
      %s54 = sphi 0, %s52
      %s55 = sphi 0, %s54
      %s69 = sphi 0, %s55
      %s73 = sphi 0, %s73
      %s75 = sphi 0, %s73
      %s76 = sphi 0, %s75
      %s90 = sphi 0, %s76
      %s94 = sphi 0, %s94
      %s96 = sphi 0, %s94
      %s97 = sphi 0, %s96
      %s111 = sphi 0, %s97
      %s115 = sphi 0, %s115
      %s117 = sphi 0, %s115
      %s118 = sphi 0, %s117
      %s132 = sphi 0, %s118
      %s136 = sphi 0, %s136
      %s138 = sphi 0, %s136
      %s139 = sphi 0, %s138
      %s153 = sphi 0, %s139
      %s157 = sphi 0, %s157
      %s159 = sphi 0, %s157
      %s160 = sphi 0, %s159
      %s174 = sphi 0, %s160
      %s178 = sphi 0, %s178
      %s180 = sphi 0, %s178
      %s181 = sphi 0, %s180
      %s195 = sphi 0, %s181
      %s199 = sphi 0, %s199
      %s201 = sphi 0, %s199
      %s202 = sphi 0, %s201
      %s216 = sphi 0, %s202
      %s222 = sphi 0, %s224
      %s225 = sphi 0, %s222
      %s226 = sphi 0, %s225
      %s242 = sphi 0, %s226
    $region4: #{tpu_custom_call.1} parent=1 // loop_header_branch
      %21 = sbr.rel (%p19) target = $region8
    $region5: #{tpu_custom_call.1} parent=1 // loop_body
      %s23 = ssub.s32 %s18, 1
      %s24 = ssub.s32 %s18, 2
      %s25 = sadd.s32 %s18, 1
      %s26 = ssub.s32 %s18, %s25
      %p27 = scmp.eq.s32.totalorder %s26, 0
      %s29 = sadd.s32 %s28, 1
      %s30 = scalar_select %p27, %s28, %s29
      %p33 = pneg %p27
      %p34 = scmp.eq.s32.totalorder %s18, 3
      %p35 = por %p33, %p34
      %p36 = scmp.ne.s32.totalorder %s28, %s31
      %p37 = scmp.eq.s32.totalorder %s18, 0
      %p38 = por %p36, %p37
      %p39 = scmp.ne.s32.totalorder %s28, %s31
      %p40 = scmp.eq.s32.totalorder %s23, 3
      %p41 = por %p39, %p40
      %p42 = scmp.ne.s32.totalorder %s31, %s32
      %p43 = scmp.eq.s32.totalorder %s23, 0
      %p44 = por %p42, %p43
      %p45 = scmp.ne.s32.totalorder %s31, %s32
      %p46 = scmp.eq.s32.totalorder %s24, 3
      %p47 = por %p45, %p46
      %p49 = scmp.ne.s32.totalorder %s32, %s48
      %p50 = scmp.eq.s32.totalorder %s24, 0
      %p51 = por %p49, %p50
      %s53 = sadd.s32 %s52, 1
      %p56 = scmp.eq.s32.totalorder %s18, 3
      %p57 = scmp.ne.s32.totalorder %s52, %s54
      %p58 = scmp.eq.s32.totalorder %s18, 0
      %p59 = por %p57, %p58
      %p60 = scmp.ne.s32.totalorder %s52, %s54
      %p61 = scmp.eq.s32.totalorder %s23, 3
      %p62 = por %p60, %p61
      %p63 = scmp.ne.s32.totalorder %s54, %s55
      %p64 = scmp.eq.s32.totalorder %s23, 0
      %p65 = por %p63, %p64
      %p66 = scmp.ne.s32.totalorder %s54, %s55
      %p67 = scmp.eq.s32.totalorder %s24, 3
      %p68 = por %p66, %p67
      %p70 = scmp.ne.s32.totalorder %s55, %s69
      %p71 = scmp.eq.s32.totalorder %s24, 0
      %p72 = por %p70, %p71
      %s74 = sadd.s32 %s73, 1
      %p77 = scmp.eq.s32.totalorder %s18, 3
      %p78 = scmp.ne.s32.totalorder %s73, %s75
      %p79 = scmp.eq.s32.totalorder %s18, 0
      %p80 = por %p78, %p79
      %p81 = scmp.ne.s32.totalorder %s73, %s75
      %p82 = scmp.eq.s32.totalorder %s23, 3
      %p83 = por %p81, %p82
      %p84 = scmp.ne.s32.totalorder %s75, %s76
      %p85 = scmp.eq.s32.totalorder %s23, 0
      %p86 = por %p84, %p85
      %p87 = scmp.ne.s32.totalorder %s75, %s76
      %p88 = scmp.eq.s32.totalorder %s24, 3
      %p89 = por %p87, %p88
      %p91 = scmp.ne.s32.totalorder %s76, %s90
      %p92 = scmp.eq.s32.totalorder %s24, 0
      %p93 = por %p91, %p92
      %s95 = sadd.s32 %s94, 1
      %p98 = scmp.eq.s32.totalorder %s18, 3
      %p99 = scmp.ne.s32.totalorder %s94, %s96
      %p100 = scmp.eq.s32.totalorder %s18, 0
      %p101 = por %p99, %p100
      %p102 = scmp.ne.s32.totalorder %s94, %s96
      %p103 = scmp.eq.s32.totalorder %s23, 3
      %p104 = por %p102, %p103
      %p105 = scmp.ne.s32.totalorder %s96, %s97
      %p106 = scmp.eq.s32.totalorder %s23, 0
      %p107 = por %p105, %p106
      %p108 = scmp.ne.s32.totalorder %s96, %s97
      %p109 = scmp.eq.s32.totalorder %s24, 3
      %p110 = por %p108, %p109
      %p112 = scmp.ne.s32.totalorder %s97, %s111
      %p113 = scmp.eq.s32.totalorder %s24, 0
      %p114 = por %p112, %p113
      %s116 = sadd.s32 %s115, 1
      %p119 = scmp.eq.s32.totalorder %s18, 3
      %p120 = scmp.ne.s32.totalorder %s115, %s117
      %p121 = scmp.eq.s32.totalorder %s18, 0
      %p122 = por %p120, %p121
      %p123 = scmp.ne.s32.totalorder %s115, %s117
      %p124 = scmp.eq.s32.totalorder %s23, 3
      %p125 = por %p123, %p124
      %p126 = scmp.ne.s32.totalorder %s117, %s118
      %p127 = scmp.eq.s32.totalorder %s23, 0
      %p128 = por %p126, %p127
      %p129 = scmp.ne.s32.totalorder %s117, %s118
      %p130 = scmp.eq.s32.totalorder %s24, 3
      %p131 = por %p129, %p130
      %p133 = scmp.ne.s32.totalorder %s118, %s132
      %p134 = scmp.eq.s32.totalorder %s24, 0
      %p135 = por %p133, %p134
      %s137 = sadd.s32 %s136, 1
      %p140 = scmp.eq.s32.totalorder %s18, 3
      %p141 = scmp.ne.s32.totalorder %s136, %s138
      %p142 = scmp.eq.s32.totalorder %s18, 0
      %p143 = por %p141, %p142
      %p144 = scmp.ne.s32.totalorder %s136, %s138
      %p145 = scmp.eq.s32.totalorder %s23, 3
      %p146 = por %p144, %p145
      %p147 = scmp.ne.s32.totalorder %s138, %s139
      %p148 = scmp.eq.s32.totalorder %s23, 0
      %p149 = por %p147, %p148
      %p150 = scmp.ne.s32.totalorder %s138, %s139
      %p151 = scmp.eq.s32.totalorder %s24, 3
      %p152 = por %p150, %p151
      %p154 = scmp.ne.s32.totalorder %s139, %s153
      %p155 = scmp.eq.s32.totalorder %s24, 0
      %p156 = por %p154, %p155
      %s158 = sadd.s32 %s157, 1
      %p161 = scmp.eq.s32.totalorder %s18, 3
      %p162 = scmp.ne.s32.totalorder %s157, %s159
      %p163 = scmp.eq.s32.totalorder %s18, 0
      %p164 = por %p162, %p163
      %p165 = scmp.ne.s32.totalorder %s157, %s159
      %p166 = scmp.eq.s32.totalorder %s23, 3
      %p167 = por %p165, %p166
      %p168 = scmp.ne.s32.totalorder %s159, %s160
      %p169 = scmp.eq.s32.totalorder %s23, 0
      %p170 = por %p168, %p169
      %p171 = scmp.ne.s32.totalorder %s159, %s160
      %p172 = scmp.eq.s32.totalorder %s24, 3
      %p173 = por %p171, %p172
      %p175 = scmp.ne.s32.totalorder %s160, %s174
      %p176 = scmp.eq.s32.totalorder %s24, 0
      %p177 = por %p175, %p176
      %s179 = sadd.s32 %s178, 1
      %p182 = scmp.eq.s32.totalorder %s18, 3
      %p183 = scmp.ne.s32.totalorder %s178, %s180
      %p184 = scmp.eq.s32.totalorder %s18, 0
      %p185 = por %p183, %p184
      %p186 = scmp.ne.s32.totalorder %s178, %s180
      %p187 = scmp.eq.s32.totalorder %s23, 3
      %p188 = por %p186, %p187
      %p189 = scmp.ne.s32.totalorder %s180, %s181
      %p190 = scmp.eq.s32.totalorder %s23, 0
      %p191 = por %p189, %p190
      %p192 = scmp.ne.s32.totalorder %s180, %s181
      %p193 = scmp.eq.s32.totalorder %s24, 3
      %p194 = por %p192, %p193
      %p196 = scmp.ne.s32.totalorder %s181, %s195
      %p197 = scmp.eq.s32.totalorder %s24, 0
      %p198 = por %p196, %p197
      %s200 = sadd.s32 %s199, 1
      %p203 = scmp.eq.s32.totalorder %s18, 3
      %p204 = scmp.ne.s32.totalorder %s199, %s201
      %p205 = scmp.eq.s32.totalorder %s18, 0
      %p206 = por %p204, %p205
      %p207 = scmp.ne.s32.totalorder %s199, %s201
      %p208 = scmp.eq.s32.totalorder %s23, 3
      %p209 = por %p207, %p208
      %p210 = scmp.ne.s32.totalorder %s201, %s202
      %p211 = scmp.eq.s32.totalorder %s23, 0
      %p212 = por %p210, %p211
      %p213 = scmp.ne.s32.totalorder %s201, %s202
      %p214 = scmp.eq.s32.totalorder %s24, 3
      %p215 = por %p213, %p214
      %p217 = scmp.ne.s32.totalorder %s202, %s216
      %p218 = scmp.eq.s32.totalorder %s24, 0
      %p219 = por %p217, %p218
      %s220 = ssub.s32 %s18, %s25
      %p221 = scmp.eq.s32.totalorder %s220, 0
      %s223 = sadd.s32 %s222, 1
      %s224 = scalar_select %p221, %s222, %s223
      %p227 = pneg %p221
      %p228 = scmp.eq.s32.totalorder %s18, 3
      %p229 = por %p227, %p228
      %p230 = scmp.ne.s32.totalorder %s222, %s225
      %p231 = scmp.eq.s32.totalorder %s18, 0
      %p232 = por %p230, %p231
      %p233 = scmp.ne.s32.totalorder %s222, %s225
      %p234 = scmp.eq.s32.totalorder %s23, 3
      %p235 = por %p233, %p234
      %p236 = scmp.ne.s32.totalorder %s225, %s226
      %p237 = scmp.eq.s32.totalorder %s23, 0
      %p238 = por %p236, %p237
      %p239 = scmp.ne.s32.totalorder %s225, %s226
      %p240 = scmp.eq.s32.totalorder %s24, 3
      %p241 = por %p239, %p240
      %p243 = scmp.ne.s32.totalorder %s226, %s242
      %p244 = scmp.eq.s32.totalorder %s24, 0
      %p245 = por %p243, %p244
      %p246 = scmp.le.s32.totalorder 1, %s18
      %p247 = scmp.lt.s32.totalorder %s18, 5
      %p248 = pnand %p246, %p247
      %p249 = pneg %p248
      // Predicated region
      $region9: #{tpu_custom_call.1} parent=5 // pred_check
        _
      $region10: #{tpu_custom_call.1} parent=5 // pred_check_branch
        %251 = sbr.rel (%p248) target = $region12
      $region11: #{tpu_custom_call.1} parent=5 // pred_region
        %s252 = ssub.s32 %s18, 1
        // Predicated region
        $region13: #{tpu_custom_call.1} parent=11 // pred_check
          %p253 = pneg %p65
        $region14: #{tpu_custom_call.1} parent=11 // pred_check_branch
          %255 = sbr.rel (%p253) target = $region16
        $region15: #{tpu_custom_call.1} parent=11 // pred_region
          _
        $region16: #{tpu_custom_call.1} parent=11 // pred_fallthru
          _
        // Predicated region
        $region17: #{tpu_custom_call.1} parent=11 // pred_check
          %p256 = pneg %p86
        $region18: #{tpu_custom_call.1} parent=11 // pred_check_branch
          %258 = sbr.rel (%p256) target = $region20
        $region19: #{tpu_custom_call.1} parent=11 // pred_region
          _
        $region20: #{tpu_custom_call.1} parent=11 // pred_fallthru
          _
        // Predicated region
        $region21: #{tpu_custom_call.1} parent=11 // pred_check
          %p259 = pneg %p107
        $region22: #{tpu_custom_call.1} parent=11 // pred_check_branch
          %261 = sbr.rel (%p259) target = $region24
        $region23: #{tpu_custom_call.1} parent=11 // pred_region
          _
        $region24: #{tpu_custom_call.1} parent=11 // pred_fallthru
          _
        // Predicated region
        $region25: #{tpu_custom_call.1} parent=11 // pred_check
          %p262 = pneg %p128
        $region26: #{tpu_custom_call.1} parent=11 // pred_check_branch
          %264 = sbr.rel (%p262) target = $region28
        $region27: #{tpu_custom_call.1} parent=11 // pred_region
          _
        $region28: #{tpu_custom_call.1} parent=11 // pred_fallthru
          _
        // Predicated region
        $region29: #{tpu_custom_call.1} parent=11 // pred_check
          %p265 = pneg %p149
        $region30: #{tpu_custom_call.1} parent=11 // pred_check_branch
          %267 = sbr.rel (%p265) target = $region32
        $region31: #{tpu_custom_call.1} parent=11 // pred_region
          _
        $region32: #{tpu_custom_call.1} parent=11 // pred_fallthru
          _
        // Predicated region
        $region33: #{tpu_custom_call.1} parent=11 // pred_check
          %p268 = pneg %p170
        $region34: #{tpu_custom_call.1} parent=11 // pred_check_branch
          %270 = sbr.rel (%p268) target = $region36
        $region35: #{tpu_custom_call.1} parent=11 // pred_region
          _
        $region36: #{tpu_custom_call.1} parent=11 // pred_fallthru
          _
        // Predicated region
        $region37: #{tpu_custom_call.1} parent=11 // pred_check
          %p271 = pneg %p191
        $region38: #{tpu_custom_call.1} parent=11 // pred_check_branch
          %273 = sbr.rel (%p271) target = $region40
        $region39: #{tpu_custom_call.1} parent=11 // pred_region
          _
        $region40: #{tpu_custom_call.1} parent=11 // pred_fallthru
          _
        // Predicated region
        $region41: #{tpu_custom_call.1} parent=11 // pred_check
          %p274 = pneg %p212
        $region42: #{tpu_custom_call.1} parent=11 // pred_check_branch
          %276 = sbr.rel (%p274) target = $region44
        $region43: #{tpu_custom_call.1} parent=11 // pred_region
          _
        $region44: #{tpu_custom_call.1} parent=11 // pred_fallthru
          _
      $region12: #{tpu_custom_call.1} parent=5 // pred_fallthru
        _
      %p277 = scmp.lt.s32.totalorder %s18, 4
      // Predicated region
      $region45: #{tpu_custom_call.1} parent=5 // pred_check
        %p278 = pneg %p277
      $region46: #{tpu_custom_call.1} parent=5 // pred_check_branch
        %280 = sbr.rel (%p278) target = $region48
      $region47: #{tpu_custom_call.1} parent=5 // pred_region
        // Predicated region
        $region49: #{tpu_custom_call.1} parent=47 // pred_check
          %p281 = pneg %p38
        $region50: #{tpu_custom_call.1} parent=47 // pred_check_branch
          %283 = sbr.rel (%p281) target = $region52
        $region51: #{tpu_custom_call.1} parent=47 // pred_region
          %s284 = smul.u32 2, %s18
          %p285 = scmp.lt.s32.totalorder %s284, 7
          %s286 = scalar_select %p285, %s284, 7
          %s287 = smul.addr %s286, 4
          %s288 = scalar_lea.vmem %s0, %s287
          %s289 = smul.u32 2, %s18
        $region52: #{tpu_custom_call.1} parent=47 // pred_fallthru
          _
      $region48: #{tpu_custom_call.1} parent=5 // pred_fallthru
        _
      %p290 = scmp.le.s32.totalorder 1, %s18
      %p291 = scmp.lt.s32.totalorder %s18, 5
      %p292 = pnand %p290, %p291
      %p293 = pneg %p292
      // Predicated region
      $region53: #{tpu_custom_call.1} parent=5 // pred_check
        _
      $region54: #{tpu_custom_call.1} parent=5 // pred_check_branch
        %295 = sbr.rel (%p292) target = $region56
      $region55: #{tpu_custom_call.1} parent=5 // pred_region
        %s296 = ssub.s32 %s18, 1
        %s297 = smul.u32 2, %s23
        %p298 = scmp.lt.s32.totalorder %s297, 7
        %s299 = scalar_select %p298, %s297, 7
        %s300 = smul.addr %s299, 4
        %s301 = scalar_lea.vmem %s0, %s300
        %p302 = pneg %p44
        %p303 = pneg %p41
        %p304 = pneg %p65
        %p305 = pneg %p62
        %p306 = pneg %p86
        %p307 = pneg %p83
        %p308 = pneg %p107
        %p309 = pneg %p104
        %p310 = pneg %p128
        %p311 = pneg %p125
        %p312 = pneg %p149
        %p313 = pneg %p146
        %p314 = pneg %p170
        %p315 = pneg %p167
        %p316 = pneg %p191
        %p317 = pneg %p188
        %p318 = pneg %p212
        %p319 = pneg %p209
        %p320 = pneg %p238
        %p321 = pneg %p235
        %s322 = sand.u32 %s225, 1
        %s323 = scalar_lea.sflag [#allocation3], %s322
        %s324 = sand.u32 %s225, 1
        %s325 = smul.addr %s324, 8
        %s326 = scalar_lea.vmem [#allocation2], %s325
        %s327 = smul.u32 2, %s23
        %p328 = scmp.lt.s32.totalorder %s327, 7
        %s329 = scalar_select %p328, %s327, 7
        %s330 = smul.addr %s329, 4
        %s331 = scalar_lea.vmem %s0, %s330
        %s332 = smul.u32 2, %s23
        %s333 = smul.u32 2, %s23
        %v334 = vld [vmem:[%s331] sm:$0x77]
        %v335 = vld [vmem:[%s1] sm:$0xff]
        %v336 = vld [vmem:[%s1 + $0x8] sm:$0xff]
        %v337 = vld [vmem:[%s1 + $0x10] sm:$0xff]
        %v338 = vld [vmem:[%s1 + $0x18] sm:$0xff]
        %v340 = vcombine.high %v334, %v334
        %vm341 = vcmask 23552
        %v343 = vsel %vm341, %v335, 0
        %v346 = vsel %vm341, %v336, 0
        %v349 = vsel %vm341, %v337, 0
        %v352 = vsel %vm341, %v338, 0
        %vm354 = vcmask 1042432
        %v355 = vsel %vm354, %v334, 0
        %v357 = vsel %vm354, %v340, 0
        %359 = vmatprep.subr.mxu0 %v357
        %360 = vmatpush1.msra.mxu0 %v355
        %361 = vmatprep.subr.mxu0 0.0
        %362 = vmatpush1.msra.mxu0 0.0
        %363 = vmatprep.subr.mxu0 0.0
        %364 = vmatpush1.msra.mxu0 0.0
        %365 = vmatprep.subr.mxu0 0.0
        %366 = vmatpush1.msra.mxu0 0.0
        %367 = vmatprep.subr.mxu0 0.0
        %368 = vmatpush1.msra.mxu0 0.0
        %369 = vmatprep.subr.mxu0 0.0
        %370 = vmatpush1.msra.mxu0 0.0
        %371 = vmatprep.subr.mxu0 0.0
        %372 = vmatpush1.msra.mxu0 0.0
        %373 = vmatprep.subr.mxu0 0.0
        %374 = vmatpush1.msra.mxu0 0.0
        %375 = vmatprep.subr.mxu0 0.0
        %376 = vmatpush1.msra.mxu0 0.0
        %377 = vmatprep.subr.mxu0 0.0
        %378 = vmatpush1.msra.mxu0 0.0
        %379 = vmatprep.subr.mxu0 0.0
        %380 = vmatpush1.msra.mxu0 0.0
        %381 = vmatprep.subr.mxu0 0.0
        %382 = vmatpush1.msra.mxu0 0.0
        %383 = vmatprep.subr.mxu0 0.0
        %384 = vmatpush1.msra.mxu0 0.0
        %385 = vmatprep.subr.mxu0 0.0
        %386 = vmatpush1.msra.mxu0 0.0
        %387 = vmatprep.subr.mxu0 0.0
        %388 = vmatpush1.msra.mxu0 0.0
        %389 = vmatprep.subr.mxu0 0.0
        %390 = vmatpush1.msra.mxu0 0.0
        %391 = vmatprep.subr.mxu0 0.0
        %392 = vmatpush1.msra.mxu0 0.0
        %393 = vmatprep.subr.mxu0 0.0
        %394 = vmatpush1.msra.mxu0 0.0
        %395 = vmatprep.subr.mxu0 0.0
        %396 = vmatpush1.msra.mxu0 0.0
        %397 = vmatprep.subr.mxu0 0.0
        %398 = vmatpush1.msra.mxu0 0.0
        %399 = vmatprep.subr.mxu0 0.0
        %400 = vmatpush1.msra.mxu0 0.0
        %401 = vmatprep.subr.mxu0 0.0
        %402 = vmatpush1.msra.mxu0 0.0
        %403 = vmatprep.subr.mxu0 0.0
        %404 = vmatpush1.msra.mxu0 0.0
        %405 = vmatprep.subr.mxu0 0.0
        %406 = vmatpush1.msra.mxu0 0.0
        %407 = vmatprep.subr.mxu0 0.0
        %408 = vmatpush1.msra.mxu0 0.0
        %409 = vmatprep.subr.mxu0 0.0
        %410 = vmatpush1.msra.mxu0 0.0
        %411 = vmatprep.subr.mxu0 0.0
        %412 = vmatpush1.msra.mxu0 0.0
        %413 = vmatprep.subr.mxu0 0.0
        %414 = vmatpush1.msra.mxu0 0.0
        %415 = vmatprep.subr.mxu0 0.0
        %416 = vmatpush1.msra.mxu0 0.0
        %417 = vmatprep.subr.mxu0 0.0
        %418 = vmatpush1.msra.mxu0 0.0
        %419 = vmatprep.subr.mxu0 0.0
        %420 = vmatpush1.msra.mxu0 0.0
        %421 = vmatprep.subr.mxu0 0.0
        %422 = vmatpush1.msra.mxu0 0.0
        %423 = vmatprep.mubr.f32.mxu0 0.0
        %424 = vmatmul.mubr.f32.gmra.mrb[0].mxu0 %v343
        %v425 = vpop.f32.mrb[0].mxu0
        %v426 = vadd.f32 0.0, %v425
        %v427 = vpop.f32.mrb[0].mxu0
        %v428 = vadd.f32 0.0, %v427
        %429 = vmatprep.mubr.f32.mxu0 0.0
        %430 = vmatmul.mubr.f32.gmra.mrb[0].mxu0 %v346
        %v431 = vpop.f32.mrb[0].mxu0
        %v432 = vadd.f32 0.0, %v431
        %v433 = vpop.f32.mrb[0].mxu0
        %v434 = vadd.f32 0.0, %v433
        %435 = vmatprep.mubr.f32.mxu0 0.0
        %436 = vmatmul.mubr.f32.gmra.mrb[0].mxu0 %v349
        %v437 = vpop.f32.mrb[0].mxu0
        %v438 = vadd.f32 0.0, %v437
        %v439 = vpop.f32.mrb[0].mxu0
        %v440 = vadd.f32 0.0, %v439
        %441 = vmatprep.mubr.f32.mxu0 0.0
        %442 = vmatmul.mubr.f32.gmra.mrb[0].mxu0 %v352
        %v443 = vpop.f32.mrb[0].mxu0
        %v444 = vadd.f32 0.0, %v443
        %v445 = vpop.f32.mrb[0].mxu0
        %v446 = vadd.f32 0.0, %v445
        %447 = vdwg.mxu0
        %v448 = vand.u32 2147483647, %v426
        %vm449 = vcmp.le.f32.partialorder %v448, 0.7853982
        %vm450 = vcmp.lt.s32.totalorder %v426, 0
        %v451 = vand.u32 %v426, 2139095040
        %v452 = vshrl.u32 %v451, 23
        %v453 = vsub.s32 %v452, 127
        %v454 = vand.u32 2147483647, %v426
        %v455 = vand.u32 %v454, 8388607
        %v456 = vor.u32 %v455, 8388608
        %v457 = vsub.s32 0, %v456
        %v458 = vadd.s32 %v453, 1
        %vm459 = vcmp.gt.s32.totalorder %v458, 0
        %v460 = vsel %vm459, %v458, 0
        %v461 = vshrl.u32 %v460, 5
        %v462 = vand.u32 %v460, 31
        %v463 = vsub.s32 32, %v462
        %v464 = vshrl.u32 683565275, %v463
        %v465 = vshll.u32 683565275, %v462
        %v466 = vshrl.u32 2475754826, %v463
        %v467 = vor.u32 %v465, %v466
        %v468 = vshll.u32 2475754826, %v462
        %v469 = vshrl.u32 2131351028, %v463
        %v470 = vor.u32 %v468, %v469
        %v471 = vshll.u32 2131351028, %v462
        %v472 = vshrl.u32 2102212464, %v463
        %v473 = vor.u32 %v471, %v472
        %v474 = vshll.u32 2102212464, %v462
        %v475 = vshrl.u32 920167782, %v463
        %v476 = vor.u32 %v474, %v475
        %v477 = vshll.u32 920167782, %v462
        %v478 = vshrl.u32 1326507024, %v463
        %v479 = vor.u32 %v477, %v478
        %vm480 = vcmp.lt.s32.totalorder %v461, 1
        %vm481 = vcmp.lt.s32.totalorder %v461, 2
        %vm482 = vcmp.lt.s32.totalorder %v461, 3
        %vm483 = vcmp.lt.s32.totalorder %v461, 4
        %v484 = vsel %vm480, %v464, %v467
        %v485 = vsel %vm483, %v473, 2102212464
        %v486 = vsel %vm482, %v470, %v485
        %v487 = vsel %vm481, %v484, %v486
        %v488 = vsel %vm480, %v467, %v470
        %v489 = vsel %vm483, %v476, 920167782
        %v490 = vsel %vm482, %v473, %v489
        %v491 = vsel %vm481, %v488, %v490
        %v492 = vsel %vm480, %v470, %v473
        %v493 = vsel %vm483, %v479, 1326507024
        %v494 = vsel %vm482, %v476, %v493
        %v495 = vsel %vm481, %v492, %v494
        %v496 = vshll.u32 %v456, 8
        %v497 = vmul.u32.u64.compose %v496, %v495
        %v498 = vextract.low.u32 %v497
        %v499 = vextract.high.u32 %v497
        %v500 = vmul.u32.u64.compose %v496, %v491
        %v501 = vextract.low.u32 %v500
        %v502 = vextract.high.u32 %v500
        %v503 = vmul.u32 %v496, %v487
        %v504 = vadd.s32 %v499, %v501
        %vm505 = vc.u32 %v499, %v501
        %v506 = vadd.s32 %v502, 1
        %v507 = vsel %vm505, %v506, %v502
        %v508 = vadd.s32 %v503, %v507
        %v509 = vadd.s32 %v508, 536870912
        %v510 = vshrl.u32 %v509, 30
        %v511 = vshll.u32 %v510, 30
        %v512 = vsub.s32 %v508, %v511
        %vm513 = vcmp.lt.s32.totalorder %v512, 0
        %v514 = vsub.s32 0, %v512
        %v515 = vsel %vm513, %v514, %v512
        %v516 = vclz %v515
        %v517 = vsub.s32 %v516, 2
        %vm518 = vcmp.gt.s32.totalorder 0, %v517
        %v519 = vsel %vm518, 0, %v517
        %v520 = vsub.s32 32, %v519
        %v521 = vshll.u32 %v512, %v519
        %v522 = vshrl.u32 %v504, %v520
        %v523 = vor.u32 %v521, %v522
        %v524 = vsub.s32 4294967266, %v519
        %v525 = vadd.s32 %v524, 127
        %v526 = vshll.u32 %v525, 23
        %v527 = vor.u32 4788187, %v526
        %v528 = vand.u32 2147483647, %v527
        %v530 = vcvt.s32.f32 %v523
        %v531 = vmul.f32 %v530, %v528
        %v532 = vxor.u32 %v531, 2147483648
        %v533 = vsel %vm450, %v532, %v531
        %v534 = vsub.s32 4, %v510
        %v535 = vsel %vm450, %v534, %v510
        %v536 = vsel %vm449, %v426, %v533
        %v537 = vsel %vm449, 0, %v535
        %v538 = vcosq.f32.pop %v536
        %v539 = vsinq.f32.pop %v536
        %vm540 = vweird.f32 %v426
        %v541 = vadd.s32 %v537, 3
        %v542 = vand.u32 %v541, 3
        %vm543 = vcmp.lt.s32.totalorder %v542, 2
        %vm544 = vcmp.eq.s32.totalorder %v542, 0
        %v545 = vxor.u32 %v539, 2147483648
        %v546 = vsel %vm544, %v538, %v545
        %vm547 = vcmp.eq.s32.totalorder %v542, 2
        %v548 = vxor.u32 %v538, 2147483648
        %v549 = vsel %vm547, %v548, %v539
        %v550 = vsel %vm543, %v546, %v549
        %v551 = vsel %vm540, nan, %v550
        %v552 = vand.u32 2147483647, %v428
        %vm553 = vcmp.le.f32.partialorder %v552, 0.7853982
        %vm554 = vcmp.lt.s32.totalorder %v428, 0
        %v555 = vand.u32 %v428, 2139095040
        %v556 = vshrl.u32 %v555, 23
        %v557 = vsub.s32 %v556, 127
        %v558 = vand.u32 2147483647, %v428
        %v559 = vand.u32 %v558, 8388607
        %v560 = vor.u32 %v559, 8388608
        %v561 = vsub.s32 0, %v560
        %v562 = vadd.s32 %v557, 1
        %vm563 = vcmp.gt.s32.totalorder %v562, 0
        %v564 = vsel %vm563, %v562, 0
        %v565 = vshrl.u32 %v564, 5
        %v566 = vand.u32 %v564, 31
        %v567 = vsub.s32 32, %v566
        %v568 = vshrl.u32 683565275, %v567
        %v569 = vshll.u32 683565275, %v566
        %v570 = vshrl.u32 2475754826, %v567
        %v571 = vor.u32 %v569, %v570
        %v572 = vshll.u32 2475754826, %v566
        %v573 = vshrl.u32 2131351028, %v567
        %v574 = vor.u32 %v572, %v573
        %v575 = vshll.u32 2131351028, %v566
        %v576 = vshrl.u32 2102212464, %v567
        %v577 = vor.u32 %v575, %v576
        %v578 = vshll.u32 2102212464, %v566
        %v579 = vshrl.u32 920167782, %v567
        %v580 = vor.u32 %v578, %v579
        %v581 = vshll.u32 920167782, %v566
        %v582 = vshrl.u32 1326507024, %v567
        %v583 = vor.u32 %v581, %v582
        %vm584 = vcmp.lt.s32.totalorder %v565, 1
        %vm585 = vcmp.lt.s32.totalorder %v565, 2
        %vm586 = vcmp.lt.s32.totalorder %v565, 3
        %vm587 = vcmp.lt.s32.totalorder %v565, 4
        %v588 = vsel %vm584, %v568, %v571
        %v589 = vsel %vm587, %v577, 2102212464
        %v590 = vsel %vm586, %v574, %v589
        %v591 = vsel %vm585, %v588, %v590
        %v592 = vsel %vm584, %v571, %v574
        %v593 = vsel %vm587, %v580, 920167782
        %v594 = vsel %vm586, %v577, %v593
        %v595 = vsel %vm585, %v592, %v594
        %v596 = vsel %vm584, %v574, %v577
        %v597 = vsel %vm587, %v583, 1326507024
        %v598 = vsel %vm586, %v580, %v597
        %v599 = vsel %vm585, %v596, %v598
        %v600 = vshll.u32 %v560, 8
        %v601 = vmul.u32.u64.compose %v600, %v599
        %v602 = vextract.low.u32 %v601
        %v603 = vextract.high.u32 %v601
        %v604 = vmul.u32.u64.compose %v600, %v595
        %v605 = vextract.low.u32 %v604
        %v606 = vextract.high.u32 %v604
        %v607 = vmul.u32 %v600, %v591
        %v608 = vadd.s32 %v603, %v605
        %vm609 = vc.u32 %v603, %v605
        %v610 = vadd.s32 %v606, 1
        %v611 = vsel %vm609, %v610, %v606
        %v612 = vadd.s32 %v607, %v611
        %v613 = vadd.s32 %v612, 536870912
        %v614 = vshrl.u32 %v613, 30
        %v615 = vshll.u32 %v614, 30
        %v616 = vsub.s32 %v612, %v615
        %vm617 = vcmp.lt.s32.totalorder %v616, 0
        %v618 = vsub.s32 0, %v616
        %v619 = vsel %vm617, %v618, %v616
        %v620 = vclz %v619
        %v621 = vsub.s32 %v620, 2
        %vm622 = vcmp.gt.s32.totalorder 0, %v621
        %v623 = vsel %vm622, 0, %v621
        %v624 = vsub.s32 32, %v623
        %v625 = vshll.u32 %v616, %v623
        %v626 = vshrl.u32 %v608, %v624
        %v627 = vor.u32 %v625, %v626
        %v628 = vsub.s32 4294967266, %v623
        %v629 = vadd.s32 %v628, 127
        %v630 = vshll.u32 %v629, 23
        %v631 = vor.u32 4788187, %v630
        %v632 = vand.u32 2147483647, %v631
        %v634 = vcvt.s32.f32 %v627
        %v635 = vmul.f32 %v634, %v632
        %v636 = vxor.u32 %v635, 2147483648
        %v637 = vsel %vm554, %v636, %v635
        %v638 = vsub.s32 4, %v614
        %v639 = vsel %vm554, %v638, %v614
        %v640 = vsel %vm553, %v428, %v637
        %v641 = vsel %vm553, 0, %v639
        %v642 = vcosq.f32.pop %v640
        %v643 = vsinq.f32.pop %v640
        %vm644 = vweird.f32 %v428
        %v645 = vadd.s32 %v641, 3
        %v646 = vand.u32 %v645, 3
        %vm647 = vcmp.lt.s32.totalorder %v646, 2
        %vm648 = vcmp.eq.s32.totalorder %v646, 0
        %v649 = vxor.u32 %v643, 2147483648
        %v650 = vsel %vm648, %v642, %v649
        %vm651 = vcmp.eq.s32.totalorder %v646, 2
        %v652 = vxor.u32 %v642, 2147483648
        %v653 = vsel %vm651, %v652, %v643
        %v654 = vsel %vm647, %v650, %v653
        %v655 = vsel %vm644, nan, %v654
        %v656 = vand.u32 2147483647, %v432
        %vm657 = vcmp.le.f32.partialorder %v656, 0.7853982
        %vm658 = vcmp.lt.s32.totalorder %v432, 0
        %v659 = vand.u32 %v432, 2139095040
        %v660 = vshrl.u32 %v659, 23
        %v661 = vsub.s32 %v660, 127
        %v662 = vand.u32 2147483647, %v432
        %v663 = vand.u32 %v662, 8388607
        %v664 = vor.u32 %v663, 8388608
        %v665 = vsub.s32 0, %v664
        %v666 = vadd.s32 %v661, 1
        %vm667 = vcmp.gt.s32.totalorder %v666, 0
        %v668 = vsel %vm667, %v666, 0
        %v669 = vshrl.u32 %v668, 5
        %v670 = vand.u32 %v668, 31
        %v671 = vsub.s32 32, %v670
        %v672 = vshrl.u32 683565275, %v671
        %v673 = vshll.u32 683565275, %v670
        %v674 = vshrl.u32 2475754826, %v671
        %v675 = vor.u32 %v673, %v674
        %v676 = vshll.u32 2475754826, %v670
        %v677 = vshrl.u32 2131351028, %v671
        %v678 = vor.u32 %v676, %v677
        %v679 = vshll.u32 2131351028, %v670
        %v680 = vshrl.u32 2102212464, %v671
        %v681 = vor.u32 %v679, %v680
        %v682 = vshll.u32 2102212464, %v670
        %v683 = vshrl.u32 920167782, %v671
        %v684 = vor.u32 %v682, %v683
        %v685 = vshll.u32 920167782, %v670
        %v686 = vshrl.u32 1326507024, %v671
        %v687 = vor.u32 %v685, %v686
        %vm688 = vcmp.lt.s32.totalorder %v669, 1
        %vm689 = vcmp.lt.s32.totalorder %v669, 2
        %vm690 = vcmp.lt.s32.totalorder %v669, 3
        %vm691 = vcmp.lt.s32.totalorder %v669, 4
        %v692 = vsel %vm688, %v672, %v675
        %v693 = vsel %vm691, %v681, 2102212464
        %v694 = vsel %vm690, %v678, %v693
        %v695 = vsel %vm689, %v692, %v694
        %v696 = vsel %vm688, %v675, %v678
        %v697 = vsel %vm691, %v684, 920167782
        %v698 = vsel %vm690, %v681, %v697
        %v699 = vsel %vm689, %v696, %v698
        %v700 = vsel %vm688, %v678, %v681
        %v701 = vsel %vm691, %v687, 1326507024
        %v702 = vsel %vm690, %v684, %v701
        %v703 = vsel %vm689, %v700, %v702
        %v704 = vshll.u32 %v664, 8
        %v705 = vmul.u32.u64.compose %v704, %v703
        %v706 = vextract.low.u32 %v705
        %v707 = vextract.high.u32 %v705
        %v708 = vmul.u32.u64.compose %v704, %v699
        %v709 = vextract.low.u32 %v708
        %v710 = vextract.high.u32 %v708
        %v711 = vmul.u32 %v704, %v695
        %v712 = vadd.s32 %v707, %v709
        %vm713 = vc.u32 %v707, %v709
        %v714 = vadd.s32 %v710, 1
        %v715 = vsel %vm713, %v714, %v710
        %v716 = vadd.s32 %v711, %v715
        %v717 = vadd.s32 %v716, 536870912
        %v718 = vshrl.u32 %v717, 30
        %v719 = vshll.u32 %v718, 30
        %v720 = vsub.s32 %v716, %v719
        %vm721 = vcmp.lt.s32.totalorder %v720, 0
        %v722 = vsub.s32 0, %v720
        %v723 = vsel %vm721, %v722, %v720
        %v724 = vclz %v723
        %v725 = vsub.s32 %v724, 2
        %vm726 = vcmp.gt.s32.totalorder 0, %v725
        %v727 = vsel %vm726, 0, %v725
        %v728 = vsub.s32 32, %v727
        %v729 = vshll.u32 %v720, %v727
        %v730 = vshrl.u32 %v712, %v728
        %v731 = vor.u32 %v729, %v730
        %v732 = vsub.s32 4294967266, %v727
        %v733 = vadd.s32 %v732, 127
        %v734 = vshll.u32 %v733, 23
        %v735 = vor.u32 4788187, %v734
        %v736 = vand.u32 2147483647, %v735
        %v738 = vcvt.s32.f32 %v731
        %v739 = vmul.f32 %v738, %v736
        %v740 = vxor.u32 %v739, 2147483648
        %v741 = vsel %vm658, %v740, %v739
        %v742 = vsub.s32 4, %v718
        %v743 = vsel %vm658, %v742, %v718
        %v744 = vsel %vm657, %v432, %v741
        %v745 = vsel %vm657, 0, %v743
        %v746 = vcosq.f32.pop %v744
        %v747 = vsinq.f32.pop %v744
        %vm748 = vweird.f32 %v432
        %v749 = vadd.s32 %v745, 3
        %v750 = vand.u32 %v749, 3
        %vm751 = vcmp.lt.s32.totalorder %v750, 2
        %vm752 = vcmp.eq.s32.totalorder %v750, 0
        %v753 = vxor.u32 %v747, 2147483648
        %v754 = vsel %vm752, %v746, %v753
        %vm755 = vcmp.eq.s32.totalorder %v750, 2
        %v756 = vxor.u32 %v746, 2147483648
        %v757 = vsel %vm755, %v756, %v747
        %v758 = vsel %vm751, %v754, %v757
        %v759 = vsel %vm748, nan, %v758
        %v760 = vand.u32 2147483647, %v434
        %vm761 = vcmp.le.f32.partialorder %v760, 0.7853982
        %vm762 = vcmp.lt.s32.totalorder %v434, 0
        %v763 = vand.u32 %v434, 2139095040
        %v764 = vshrl.u32 %v763, 23
        %v765 = vsub.s32 %v764, 127
        %v766 = vand.u32 2147483647, %v434
        %v767 = vand.u32 %v766, 8388607
        %v768 = vor.u32 %v767, 8388608
        %v769 = vsub.s32 0, %v768
        %v770 = vadd.s32 %v765, 1
        %vm771 = vcmp.gt.s32.totalorder %v770, 0
        %v772 = vsel %vm771, %v770, 0
        %v773 = vshrl.u32 %v772, 5
        %v774 = vand.u32 %v772, 31
        %v775 = vsub.s32 32, %v774
        %v776 = vshrl.u32 683565275, %v775
        %v777 = vshll.u32 683565275, %v774
        %v778 = vshrl.u32 2475754826, %v775
        %v779 = vor.u32 %v777, %v778
        %v780 = vshll.u32 2475754826, %v774
        %v781 = vshrl.u32 2131351028, %v775
        %v782 = vor.u32 %v780, %v781
        %v783 = vshll.u32 2131351028, %v774
        %v784 = vshrl.u32 2102212464, %v775
        %v785 = vor.u32 %v783, %v784
        %v786 = vshll.u32 2102212464, %v774
        %v787 = vshrl.u32 920167782, %v775
        %v788 = vor.u32 %v786, %v787
        %v789 = vshll.u32 920167782, %v774
        %v790 = vshrl.u32 1326507024, %v775
        %v791 = vor.u32 %v789, %v790
        %vm792 = vcmp.lt.s32.totalorder %v773, 1
        %vm793 = vcmp.lt.s32.totalorder %v773, 2
        %vm794 = vcmp.lt.s32.totalorder %v773, 3
        %vm795 = vcmp.lt.s32.totalorder %v773, 4
        %v796 = vsel %vm792, %v776, %v779
        %v797 = vsel %vm795, %v785, 2102212464
        %v798 = vsel %vm794, %v782, %v797
        %v799 = vsel %vm793, %v796, %v798
        %v800 = vsel %vm792, %v779, %v782
        %v801 = vsel %vm795, %v788, 920167782
        %v802 = vsel %vm794, %v785, %v801
        %v803 = vsel %vm793, %v800, %v802
        %v804 = vsel %vm792, %v782, %v785
        %v805 = vsel %vm795, %v791, 1326507024
        %v806 = vsel %vm794, %v788, %v805
        %v807 = vsel %vm793, %v804, %v806
        %v808 = vshll.u32 %v768, 8
        %v809 = vmul.u32.u64.compose %v808, %v807
        %v810 = vextract.low.u32 %v809
        %v811 = vextract.high.u32 %v809
        %v812 = vmul.u32.u64.compose %v808, %v803
        %v813 = vextract.low.u32 %v812
        %v814 = vextract.high.u32 %v812
        %v815 = vmul.u32 %v808, %v799
        %v816 = vadd.s32 %v811, %v813
        %vm817 = vc.u32 %v811, %v813
        %v818 = vadd.s32 %v814, 1
        %v819 = vsel %vm817, %v818, %v814
        %v820 = vadd.s32 %v815, %v819
        %v821 = vadd.s32 %v820, 536870912
        %v822 = vshrl.u32 %v821, 30
        %v823 = vshll.u32 %v822, 30
        %v824 = vsub.s32 %v820, %v823
        %vm825 = vcmp.lt.s32.totalorder %v824, 0
        %v826 = vsub.s32 0, %v824
        %v827 = vsel %vm825, %v826, %v824
        %v828 = vclz %v827
        %v829 = vsub.s32 %v828, 2
        %vm830 = vcmp.gt.s32.totalorder 0, %v829
        %v831 = vsel %vm830, 0, %v829
        %v832 = vsub.s32 32, %v831
        %v833 = vshll.u32 %v824, %v831
        %v834 = vshrl.u32 %v816, %v832
        %v835 = vor.u32 %v833, %v834
        %v836 = vsub.s32 4294967266, %v831
        %v837 = vadd.s32 %v836, 127
        %v838 = vshll.u32 %v837, 23
        %v839 = vor.u32 4788187, %v838
        %v840 = vand.u32 2147483647, %v839
        %v842 = vcvt.s32.f32 %v835
        %v843 = vmul.f32 %v842, %v840
        %v844 = vxor.u32 %v843, 2147483648
        %v845 = vsel %vm762, %v844, %v843
        %v846 = vsub.s32 4, %v822
        %v847 = vsel %vm762, %v846, %v822
        %v848 = vsel %vm761, %v434, %v845
        %v849 = vsel %vm761, 0, %v847
        %v850 = vcosq.f32.pop %v848
        %v851 = vsinq.f32.pop %v848
        %vm852 = vweird.f32 %v434
        %v853 = vadd.s32 %v849, 3
        %v854 = vand.u32 %v853, 3
        %vm855 = vcmp.lt.s32.totalorder %v854, 2
        %vm856 = vcmp.eq.s32.totalorder %v854, 0
        %v857 = vxor.u32 %v851, 2147483648
        %v858 = vsel %vm856, %v850, %v857
        %vm859 = vcmp.eq.s32.totalorder %v854, 2
        %v860 = vxor.u32 %v850, 2147483648
        %v861 = vsel %vm859, %v860, %v851
        %v862 = vsel %vm855, %v858, %v861
        %v863 = vsel %vm852, nan, %v862
        %v864 = vand.u32 2147483647, %v438
        %vm865 = vcmp.le.f32.partialorder %v864, 0.7853982
        %vm866 = vcmp.lt.s32.totalorder %v438, 0
        %v867 = vand.u32 %v438, 2139095040
        %v868 = vshrl.u32 %v867, 23
        %v869 = vsub.s32 %v868, 127
        %v870 = vand.u32 2147483647, %v438
        %v871 = vand.u32 %v870, 8388607
        %v872 = vor.u32 %v871, 8388608
        %v873 = vsub.s32 0, %v872
        %v874 = vadd.s32 %v869, 1
        %vm875 = vcmp.gt.s32.totalorder %v874, 0
        %v876 = vsel %vm875, %v874, 0
        %v877 = vshrl.u32 %v876, 5
        %v878 = vand.u32 %v876, 31
        %v879 = vsub.s32 32, %v878
        %v880 = vshrl.u32 683565275, %v879
        %v881 = vshll.u32 683565275, %v878
        %v882 = vshrl.u32 2475754826, %v879
        %v883 = vor.u32 %v881, %v882
        %v884 = vshll.u32 2475754826, %v878
        %v885 = vshrl.u32 2131351028, %v879
        %v886 = vor.u32 %v884, %v885
        %v887 = vshll.u32 2131351028, %v878
        %v888 = vshrl.u32 2102212464, %v879
        %v889 = vor.u32 %v887, %v888
        %v890 = vshll.u32 2102212464, %v878
        %v891 = vshrl.u32 920167782, %v879
        %v892 = vor.u32 %v890, %v891
        %v893 = vshll.u32 920167782, %v878
        %v894 = vshrl.u32 1326507024, %v879
        %v895 = vor.u32 %v893, %v894
        %vm896 = vcmp.lt.s32.totalorder %v877, 1
        %vm897 = vcmp.lt.s32.totalorder %v877, 2
        %vm898 = vcmp.lt.s32.totalorder %v877, 3
        %vm899 = vcmp.lt.s32.totalorder %v877, 4
        %v900 = vsel %vm896, %v880, %v883
        %v901 = vsel %vm899, %v889, 2102212464
        %v902 = vsel %vm898, %v886, %v901
        %v903 = vsel %vm897, %v900, %v902
        %v904 = vsel %vm896, %v883, %v886
        %v905 = vsel %vm899, %v892, 920167782
        %v906 = vsel %vm898, %v889, %v905
        %v907 = vsel %vm897, %v904, %v906
        %v908 = vsel %vm896, %v886, %v889
        %v909 = vsel %vm899, %v895, 1326507024
        %v910 = vsel %vm898, %v892, %v909
        %v911 = vsel %vm897, %v908, %v910
        %v912 = vshll.u32 %v872, 8
        %v913 = vmul.u32.u64.compose %v912, %v911
        %v914 = vextract.low.u32 %v913
        %v915 = vextract.high.u32 %v913
        %v916 = vmul.u32.u64.compose %v912, %v907
        %v917 = vextract.low.u32 %v916
        %v918 = vextract.high.u32 %v916
        %v919 = vmul.u32 %v912, %v903
        %v920 = vadd.s32 %v915, %v917
        %vm921 = vc.u32 %v915, %v917
        %v922 = vadd.s32 %v918, 1
        %v923 = vsel %vm921, %v922, %v918
        %v924 = vadd.s32 %v919, %v923
        %v925 = vadd.s32 %v924, 536870912
        %v926 = vshrl.u32 %v925, 30
        %v927 = vshll.u32 %v926, 30
        %v928 = vsub.s32 %v924, %v927
        %vm929 = vcmp.lt.s32.totalorder %v928, 0
        %v930 = vsub.s32 0, %v928
        %v931 = vsel %vm929, %v930, %v928
        %v932 = vclz %v931
        %v933 = vsub.s32 %v932, 2
        %vm934 = vcmp.gt.s32.totalorder 0, %v933
        %v935 = vsel %vm934, 0, %v933
        %v936 = vsub.s32 32, %v935
        %v937 = vshll.u32 %v928, %v935
        %v938 = vshrl.u32 %v920, %v936
        %v939 = vor.u32 %v937, %v938
        %v940 = vsub.s32 4294967266, %v935
        %v941 = vadd.s32 %v940, 127
        %v942 = vshll.u32 %v941, 23
        %v943 = vor.u32 4788187, %v942
        %v944 = vand.u32 2147483647, %v943
        %v946 = vcvt.s32.f32 %v939
        %v947 = vmul.f32 %v946, %v944
        %v948 = vxor.u32 %v947, 2147483648
        %v949 = vsel %vm866, %v948, %v947
        %v950 = vsub.s32 4, %v926
        %v951 = vsel %vm866, %v950, %v926
        %v952 = vsel %vm865, %v438, %v949
        %v953 = vsel %vm865, 0, %v951
        %v954 = vcosq.f32.pop %v952
        %v955 = vsinq.f32.pop %v952
        %vm956 = vweird.f32 %v438
        %v957 = vadd.s32 %v953, 3
        %v958 = vand.u32 %v957, 3
        %vm959 = vcmp.lt.s32.totalorder %v958, 2
        %vm960 = vcmp.eq.s32.totalorder %v958, 0
        %v961 = vxor.u32 %v955, 2147483648
        %v962 = vsel %vm960, %v954, %v961
        %vm963 = vcmp.eq.s32.totalorder %v958, 2
        %v964 = vxor.u32 %v954, 2147483648
        %v965 = vsel %vm963, %v964, %v955
        %v966 = vsel %vm959, %v962, %v965
        %v967 = vsel %vm956, nan, %v966
        %v968 = vand.u32 2147483647, %v440
        %vm969 = vcmp.le.f32.partialorder %v968, 0.7853982
        %vm970 = vcmp.lt.s32.totalorder %v440, 0
        %v971 = vand.u32 %v440, 2139095040
        %v972 = vshrl.u32 %v971, 23
        %v973 = vsub.s32 %v972, 127
        %v974 = vand.u32 2147483647, %v440
        %v975 = vand.u32 %v974, 8388607
        %v976 = vor.u32 %v975, 8388608
        %v977 = vsub.s32 0, %v976
        %v978 = vadd.s32 %v973, 1
        %vm979 = vcmp.gt.s32.totalorder %v978, 0
        %v980 = vsel %vm979, %v978, 0
        %v981 = vshrl.u32 %v980, 5
        %v982 = vand.u32 %v980, 31
        %v983 = vsub.s32 32, %v982
        %v984 = vshrl.u32 683565275, %v983
        %v985 = vshll.u32 683565275, %v982
        %v986 = vshrl.u32 2475754826, %v983
        %v987 = vor.u32 %v985, %v986
        %v988 = vshll.u32 2475754826, %v982
        %v989 = vshrl.u32 2131351028, %v983
        %v990 = vor.u32 %v988, %v989
        %v991 = vshll.u32 2131351028, %v982
        %v992 = vshrl.u32 2102212464, %v983
        %v993 = vor.u32 %v991, %v992
        %v994 = vshll.u32 2102212464, %v982
        %v995 = vshrl.u32 920167782, %v983
        %v996 = vor.u32 %v994, %v995
        %v997 = vshll.u32 920167782, %v982
        %v998 = vshrl.u32 1326507024, %v983
        %v999 = vor.u32 %v997, %v998
        %vm1000 = vcmp.lt.s32.totalorder %v981, 1
        %vm1001 = vcmp.lt.s32.totalorder %v981, 2
        %vm1002 = vcmp.lt.s32.totalorder %v981, 3
        %vm1003 = vcmp.lt.s32.totalorder %v981, 4
        %v1004 = vsel %vm1000, %v984, %v987
        %v1005 = vsel %vm1003, %v993, 2102212464
        %v1006 = vsel %vm1002, %v990, %v1005
        %v1007 = vsel %vm1001, %v1004, %v1006
        %v1008 = vsel %vm1000, %v987, %v990
        %v1009 = vsel %vm1003, %v996, 920167782
        %v1010 = vsel %vm1002, %v993, %v1009
        %v1011 = vsel %vm1001, %v1008, %v1010
        %v1012 = vsel %vm1000, %v990, %v993
        %v1013 = vsel %vm1003, %v999, 1326507024
        %v1014 = vsel %vm1002, %v996, %v1013
        %v1015 = vsel %vm1001, %v1012, %v1014
        %v1016 = vshll.u32 %v976, 8
        %v1017 = vmul.u32.u64.compose %v1016, %v1015
        %v1018 = vextract.low.u32 %v1017
        %v1019 = vextract.high.u32 %v1017
        %v1020 = vmul.u32.u64.compose %v1016, %v1011
        %v1021 = vextract.low.u32 %v1020
        %v1022 = vextract.high.u32 %v1020
        %v1023 = vmul.u32 %v1016, %v1007
        %v1024 = vadd.s32 %v1019, %v1021
        %vm1025 = vc.u32 %v1019, %v1021
        %v1026 = vadd.s32 %v1022, 1
        %v1027 = vsel %vm1025, %v1026, %v1022
        %v1028 = vadd.s32 %v1023, %v1027
        %v1029 = vadd.s32 %v1028, 536870912
        %v1030 = vshrl.u32 %v1029, 30
        %v1031 = vshll.u32 %v1030, 30
        %v1032 = vsub.s32 %v1028, %v1031
        %vm1033 = vcmp.lt.s32.totalorder %v1032, 0
        %v1034 = vsub.s32 0, %v1032
        %v1035 = vsel %vm1033, %v1034, %v1032
        %v1036 = vclz %v1035
        %v1037 = vsub.s32 %v1036, 2
        %vm1038 = vcmp.gt.s32.totalorder 0, %v1037
        %v1039 = vsel %vm1038, 0, %v1037
        %v1040 = vsub.s32 32, %v1039
        %v1041 = vshll.u32 %v1032, %v1039
        %v1042 = vshrl.u32 %v1024, %v1040
        %v1043 = vor.u32 %v1041, %v1042
        %v1044 = vsub.s32 4294967266, %v1039
        %v1045 = vadd.s32 %v1044, 127
        %v1046 = vshll.u32 %v1045, 23
        %v1047 = vor.u32 4788187, %v1046
        %v1048 = vand.u32 2147483647, %v1047
        %v1050 = vcvt.s32.f32 %v1043
        %v1051 = vmul.f32 %v1050, %v1048
        %v1052 = vxor.u32 %v1051, 2147483648
        %v1053 = vsel %vm970, %v1052, %v1051
        %v1054 = vsub.s32 4, %v1030
        %v1055 = vsel %vm970, %v1054, %v1030
        %v1056 = vsel %vm969, %v440, %v1053
        %v1057 = vsel %vm969, 0, %v1055
        %v1058 = vcosq.f32.pop %v1056
        %v1059 = vsinq.f32.pop %v1056
        %vm1060 = vweird.f32 %v440
        %v1061 = vadd.s32 %v1057, 3
        %v1062 = vand.u32 %v1061, 3
        %vm1063 = vcmp.lt.s32.totalorder %v1062, 2
        %vm1064 = vcmp.eq.s32.totalorder %v1062, 0
        %v1065 = vxor.u32 %v1059, 2147483648
        %v1066 = vsel %vm1064, %v1058, %v1065
        %vm1067 = vcmp.eq.s32.totalorder %v1062, 2
        %v1068 = vxor.u32 %v1058, 2147483648
        %v1069 = vsel %vm1067, %v1068, %v1059
        %v1070 = vsel %vm1063, %v1066, %v1069
        %v1071 = vsel %vm1060, nan, %v1070
        %v1072 = vand.u32 2147483647, %v444
        %vm1073 = vcmp.le.f32.partialorder %v1072, 0.7853982
        %vm1074 = vcmp.lt.s32.totalorder %v444, 0
        %v1075 = vand.u32 %v444, 2139095040
        %v1076 = vshrl.u32 %v1075, 23
        %v1077 = vsub.s32 %v1076, 127
        %v1078 = vand.u32 2147483647, %v444
        %v1079 = vand.u32 %v1078, 8388607
        %v1080 = vor.u32 %v1079, 8388608
        %v1081 = vsub.s32 0, %v1080
        %v1082 = vadd.s32 %v1077, 1
        %vm1083 = vcmp.gt.s32.totalorder %v1082, 0
        %v1084 = vsel %vm1083, %v1082, 0
        %v1085 = vshrl.u32 %v1084, 5
        %v1086 = vand.u32 %v1084, 31
        %v1087 = vsub.s32 32, %v1086
        %v1088 = vshrl.u32 683565275, %v1087
        %v1089 = vshll.u32 683565275, %v1086
        %v1090 = vshrl.u32 2475754826, %v1087
        %v1091 = vor.u32 %v1089, %v1090
        %v1092 = vshll.u32 2475754826, %v1086
        %v1093 = vshrl.u32 2131351028, %v1087
        %v1094 = vor.u32 %v1092, %v1093
        %v1095 = vshll.u32 2131351028, %v1086
        %v1096 = vshrl.u32 2102212464, %v1087
        %v1097 = vor.u32 %v1095, %v1096
        %v1098 = vshll.u32 2102212464, %v1086
        %v1099 = vshrl.u32 920167782, %v1087
        %v1100 = vor.u32 %v1098, %v1099
        %v1101 = vshll.u32 920167782, %v1086
        %v1102 = vshrl.u32 1326507024, %v1087
        %v1103 = vor.u32 %v1101, %v1102
        %vm1104 = vcmp.lt.s32.totalorder %v1085, 1
        %vm1105 = vcmp.lt.s32.totalorder %v1085, 2
        %vm1106 = vcmp.lt.s32.totalorder %v1085, 3
        %vm1107 = vcmp.lt.s32.totalorder %v1085, 4
        %v1108 = vsel %vm1104, %v1088, %v1091
        %v1109 = vsel %vm1107, %v1097, 2102212464
        %v1110 = vsel %vm1106, %v1094, %v1109
        %v1111 = vsel %vm1105, %v1108, %v1110
        %v1112 = vsel %vm1104, %v1091, %v1094
        %v1113 = vsel %vm1107, %v1100, 920167782
        %v1114 = vsel %vm1106, %v1097, %v1113
        %v1115 = vsel %vm1105, %v1112, %v1114
        %v1116 = vsel %vm1104, %v1094, %v1097
        %v1117 = vsel %vm1107, %v1103, 1326507024
        %v1118 = vsel %vm1106, %v1100, %v1117
        %v1119 = vsel %vm1105, %v1116, %v1118
        %v1120 = vshll.u32 %v1080, 8
        %v1121 = vmul.u32.u64.compose %v1120, %v1119
        %v1122 = vextract.low.u32 %v1121
        %v1123 = vextract.high.u32 %v1121
        %v1124 = vmul.u32.u64.compose %v1120, %v1115
        %v1125 = vextract.low.u32 %v1124
        %v1126 = vextract.high.u32 %v1124
        %v1127 = vmul.u32 %v1120, %v1111
        %v1128 = vadd.s32 %v1123, %v1125
        %vm1129 = vc.u32 %v1123, %v1125
        %v1130 = vadd.s32 %v1126, 1
        %v1131 = vsel %vm1129, %v1130, %v1126
        %v1132 = vadd.s32 %v1127, %v1131
        %v1133 = vadd.s32 %v1132, 536870912
        %v1134 = vshrl.u32 %v1133, 30
        %v1135 = vshll.u32 %v1134, 30
        %v1136 = vsub.s32 %v1132, %v1135
        %vm1137 = vcmp.lt.s32.totalorder %v1136, 0
        %v1138 = vsub.s32 0, %v1136
        %v1139 = vsel %vm1137, %v1138, %v1136
        %v1140 = vclz %v1139
        %v1141 = vsub.s32 %v1140, 2
        %vm1142 = vcmp.gt.s32.totalorder 0, %v1141
        %v1143 = vsel %vm1142, 0, %v1141
        %v1144 = vsub.s32 32, %v1143
        %v1145 = vshll.u32 %v1136, %v1143
        %v1146 = vshrl.u32 %v1128, %v1144
        %v1147 = vor.u32 %v1145, %v1146
        %v1148 = vsub.s32 4294967266, %v1143
        %v1149 = vadd.s32 %v1148, 127
        %v1150 = vshll.u32 %v1149, 23
        %v1151 = vor.u32 4788187, %v1150
        %v1152 = vand.u32 2147483647, %v1151
        %v1154 = vcvt.s32.f32 %v1147
        %v1155 = vmul.f32 %v1154, %v1152
        %v1156 = vxor.u32 %v1155, 2147483648
        %v1157 = vsel %vm1074, %v1156, %v1155
        %v1158 = vsub.s32 4, %v1134
        %v1159 = vsel %vm1074, %v1158, %v1134
        %v1160 = vsel %vm1073, %v444, %v1157
        %v1161 = vsel %vm1073, 0, %v1159
        %v1162 = vcosq.f32.pop %v1160
        %v1163 = vsinq.f32.pop %v1160
        %vm1164 = vweird.f32 %v444
        %v1165 = vadd.s32 %v1161, 3
        %v1166 = vand.u32 %v1165, 3
        %vm1167 = vcmp.lt.s32.totalorder %v1166, 2
        %vm1168 = vcmp.eq.s32.totalorder %v1166, 0
        %v1169 = vxor.u32 %v1163, 2147483648
        %v1170 = vsel %vm1168, %v1162, %v1169
        %vm1171 = vcmp.eq.s32.totalorder %v1166, 2
        %v1172 = vxor.u32 %v1162, 2147483648
        %v1173 = vsel %vm1171, %v1172, %v1163
        %v1174 = vsel %vm1167, %v1170, %v1173
        %v1175 = vsel %vm1164, nan, %v1174
        %v1176 = vand.u32 2147483647, %v446
        %vm1177 = vcmp.le.f32.partialorder %v1176, 0.7853982
        %vm1178 = vcmp.lt.s32.totalorder %v446, 0
        %v1179 = vand.u32 %v446, 2139095040
        %v1180 = vshrl.u32 %v1179, 23
        %v1181 = vsub.s32 %v1180, 127
        %v1182 = vand.u32 2147483647, %v446
        %v1183 = vand.u32 %v1182, 8388607
        %v1184 = vor.u32 %v1183, 8388608
        %v1185 = vsub.s32 0, %v1184
        %v1186 = vadd.s32 %v1181, 1
        %vm1187 = vcmp.gt.s32.totalorder %v1186, 0
        %v1188 = vsel %vm1187, %v1186, 0
        %v1189 = vshrl.u32 %v1188, 5
        %v1190 = vand.u32 %v1188, 31
        %v1191 = vsub.s32 32, %v1190
        %v1192 = vshrl.u32 683565275, %v1191
        %v1193 = vshll.u32 683565275, %v1190
        %v1194 = vshrl.u32 2475754826, %v1191
        %v1195 = vor.u32 %v1193, %v1194
        %v1196 = vshll.u32 2475754826, %v1190
        %v1197 = vshrl.u32 2131351028, %v1191
        %v1198 = vor.u32 %v1196, %v1197
        %v1199 = vshll.u32 2131351028, %v1190
        %v1200 = vshrl.u32 2102212464, %v1191
        %v1201 = vor.u32 %v1199, %v1200
        %v1202 = vshll.u32 2102212464, %v1190
        %v1203 = vshrl.u32 920167782, %v1191
        %v1204 = vor.u32 %v1202, %v1203
        %v1205 = vshll.u32 920167782, %v1190
        %v1206 = vshrl.u32 1326507024, %v1191
        %v1207 = vor.u32 %v1205, %v1206
        %vm1208 = vcmp.lt.s32.totalorder %v1189, 1
        %vm1209 = vcmp.lt.s32.totalorder %v1189, 2
        %vm1210 = vcmp.lt.s32.totalorder %v1189, 3
        %vm1211 = vcmp.lt.s32.totalorder %v1189, 4
        %v1212 = vsel %vm1208, %v1192, %v1195
        %v1213 = vsel %vm1211, %v1201, 2102212464
        %v1214 = vsel %vm1210, %v1198, %v1213
        %v1215 = vsel %vm1209, %v1212, %v1214
        %v1216 = vsel %vm1208, %v1195, %v1198
        %v1217 = vsel %vm1211, %v1204, 920167782
        %v1218 = vsel %vm1210, %v1201, %v1217
        %v1219 = vsel %vm1209, %v1216, %v1218
        %v1220 = vsel %vm1208, %v1198, %v1201
        %v1221 = vsel %vm1211, %v1207, 1326507024
        %v1222 = vsel %vm1210, %v1204, %v1221
        %v1223 = vsel %vm1209, %v1220, %v1222
        %v1224 = vshll.u32 %v1184, 8
        %v1225 = vmul.u32.u64.compose %v1224, %v1223
        %v1226 = vextract.low.u32 %v1225
        %v1227 = vextract.high.u32 %v1225
        %v1228 = vmul.u32.u64.compose %v1224, %v1219
        %v1229 = vextract.low.u32 %v1228
        %v1230 = vextract.high.u32 %v1228
        %v1231 = vmul.u32 %v1224, %v1215
        %v1232 = vadd.s32 %v1227, %v1229
        %vm1233 = vc.u32 %v1227, %v1229
        %v1234 = vadd.s32 %v1230, 1
        %v1235 = vsel %vm1233, %v1234, %v1230
        %v1236 = vadd.s32 %v1231, %v1235
        %v1237 = vadd.s32 %v1236, 536870912
        %v1238 = vshrl.u32 %v1237, 30
        %v1239 = vshll.u32 %v1238, 30
        %v1240 = vsub.s32 %v1236, %v1239
        %vm1241 = vcmp.lt.s32.totalorder %v1240, 0
        %v1242 = vsub.s32 0, %v1240
        %v1243 = vsel %vm1241, %v1242, %v1240
        %v1244 = vclz %v1243
        %v1245 = vsub.s32 %v1244, 2
        %vm1246 = vcmp.gt.s32.totalorder 0, %v1245
        %v1247 = vsel %vm1246, 0, %v1245
        %v1248 = vsub.s32 32, %v1247
        %v1249 = vshll.u32 %v1240, %v1247
        %v1250 = vshrl.u32 %v1232, %v1248
        %v1251 = vor.u32 %v1249, %v1250
        %v1252 = vsub.s32 4294967266, %v1247
        %v1253 = vadd.s32 %v1252, 127
        %v1254 = vshll.u32 %v1253, 23
        %v1255 = vor.u32 4788187, %v1254
        %v1256 = vand.u32 2147483647, %v1255
        %v1258 = vcvt.s32.f32 %v1251
        %v1259 = vmul.f32 %v1258, %v1256
        %v1260 = vxor.u32 %v1259, 2147483648
        %v1261 = vsel %vm1178, %v1260, %v1259
        %v1262 = vsub.s32 4, %v1238
        %v1263 = vsel %vm1178, %v1262, %v1238
        %v1264 = vsel %vm1177, %v446, %v1261
        %v1265 = vsel %vm1177, 0, %v1263
        %v1266 = vcosq.f32.pop %v1264
        %v1267 = vsinq.f32.pop %v1264
        %vm1268 = vweird.f32 %v446
        %v1269 = vadd.s32 %v1265, 3
        %v1270 = vand.u32 %v1269, 3
        %vm1271 = vcmp.lt.s32.totalorder %v1270, 2
        %vm1272 = vcmp.eq.s32.totalorder %v1270, 0
        %v1273 = vxor.u32 %v1267, 2147483648
        %v1274 = vsel %vm1272, %v1266, %v1273
        %vm1275 = vcmp.eq.s32.totalorder %v1270, 2
        %v1276 = vxor.u32 %v1266, 2147483648
        %v1277 = vsel %vm1275, %v1276, %v1267
        %v1278 = vsel %vm1271, %v1274, %v1277
        %v1279 = vsel %vm1268, nan, %v1278
        %v1280 = vand.u32 2147483647, %v426
        %vm1281 = vcmp.le.f32.partialorder %v1280, 0.7853982
        %vm1282 = vcmp.lt.s32.totalorder %v426, 0
        %v1283 = vand.u32 %v426, 2139095040
        %v1284 = vshrl.u32 %v1283, 23
        %v1285 = vsub.s32 %v1284, 127
        %v1286 = vand.u32 2147483647, %v426
        %v1287 = vand.u32 %v1286, 8388607
        %v1288 = vor.u32 %v1287, 8388608
        %v1289 = vsub.s32 0, %v1288
        %v1290 = vadd.s32 %v1285, 1
        %vm1291 = vcmp.gt.s32.totalorder %v1290, 0
        %v1292 = vsel %vm1291, %v1290, 0
        %v1293 = vshrl.u32 %v1292, 5
        %v1294 = vand.u32 %v1292, 31
        %v1295 = vsub.s32 32, %v1294
        %v1296 = vshrl.u32 683565275, %v1295
        %v1297 = vshll.u32 683565275, %v1294
        %v1298 = vshrl.u32 2475754826, %v1295
        %v1299 = vor.u32 %v1297, %v1298
        %v1300 = vshll.u32 2475754826, %v1294
        %v1301 = vshrl.u32 2131351028, %v1295
        %v1302 = vor.u32 %v1300, %v1301
        %v1303 = vshll.u32 2131351028, %v1294
        %v1304 = vshrl.u32 2102212464, %v1295
        %v1305 = vor.u32 %v1303, %v1304
        %v1306 = vshll.u32 2102212464, %v1294
        %v1307 = vshrl.u32 920167782, %v1295
        %v1308 = vor.u32 %v1306, %v1307
        %v1309 = vshll.u32 920167782, %v1294
        %v1310 = vshrl.u32 1326507024, %v1295
        %v1311 = vor.u32 %v1309, %v1310
        %vm1312 = vcmp.lt.s32.totalorder %v1293, 1
        %vm1313 = vcmp.lt.s32.totalorder %v1293, 2
        %vm1314 = vcmp.lt.s32.totalorder %v1293, 3
        %vm1315 = vcmp.lt.s32.totalorder %v1293, 4
        %v1316 = vsel %vm1312, %v1296, %v1299
        %v1317 = vsel %vm1315, %v1305, 2102212464
        %v1318 = vsel %vm1314, %v1302, %v1317
        %v1319 = vsel %vm1313, %v1316, %v1318
        %v1320 = vsel %vm1312, %v1299, %v1302
        %v1321 = vsel %vm1315, %v1308, 920167782
        %v1322 = vsel %vm1314, %v1305, %v1321
        %v1323 = vsel %vm1313, %v1320, %v1322
        %v1324 = vsel %vm1312, %v1302, %v1305
        %v1325 = vsel %vm1315, %v1311, 1326507024
        %v1326 = vsel %vm1314, %v1308, %v1325
        %v1327 = vsel %vm1313, %v1324, %v1326
        %v1328 = vshll.u32 %v1288, 8
        %v1329 = vmul.u32.u64.compose %v1328, %v1327
        %v1330 = vextract.low.u32 %v1329
        %v1331 = vextract.high.u32 %v1329
        %v1332 = vmul.u32.u64.compose %v1328, %v1323
        %v1333 = vextract.low.u32 %v1332
        %v1334 = vextract.high.u32 %v1332
        %v1335 = vmul.u32 %v1328, %v1319
        %v1336 = vadd.s32 %v1331, %v1333
        %vm1337 = vc.u32 %v1331, %v1333
        %v1338 = vadd.s32 %v1334, 1
        %v1339 = vsel %vm1337, %v1338, %v1334
        %v1340 = vadd.s32 %v1335, %v1339
        %v1341 = vadd.s32 %v1340, 536870912
        %v1342 = vshrl.u32 %v1341, 30
        %v1343 = vshll.u32 %v1342, 30
        %v1344 = vsub.s32 %v1340, %v1343
        %vm1345 = vcmp.lt.s32.totalorder %v1344, 0
        %v1346 = vsub.s32 0, %v1344
        %v1347 = vsel %vm1345, %v1346, %v1344
        %v1348 = vclz %v1347
        %v1349 = vsub.s32 %v1348, 2
        %vm1350 = vcmp.gt.s32.totalorder 0, %v1349
        %v1351 = vsel %vm1350, 0, %v1349
        %v1352 = vsub.s32 32, %v1351
        %v1353 = vshll.u32 %v1344, %v1351
        %v1354 = vshrl.u32 %v1336, %v1352
        %v1355 = vor.u32 %v1353, %v1354
        %v1356 = vsub.s32 4294967266, %v1351
        %v1357 = vadd.s32 %v1356, 127
        %v1358 = vshll.u32 %v1357, 23
        %v1359 = vor.u32 4788187, %v1358
        %v1360 = vand.u32 2147483647, %v1359
        %v1362 = vcvt.s32.f32 %v1355
        %v1363 = vmul.f32 %v1362, %v1360
        %v1364 = vxor.u32 %v1363, 2147483648
        %v1365 = vsel %vm1282, %v1364, %v1363
        %v1366 = vsub.s32 4, %v1342
        %v1367 = vsel %vm1282, %v1366, %v1342
        %v1368 = vsel %vm1281, %v426, %v1365
        %v1369 = vsel %vm1281, 0, %v1367
        %v1370 = vcosq.f32.pop %v1368
        %v1371 = vsinq.f32.pop %v1368
        %vm1372 = vweird.f32 %v426
        %v1373 = vand.u32 %v1369, 3
        %vm1374 = vcmp.lt.s32.totalorder %v1373, 2
        %vm1375 = vcmp.eq.s32.totalorder %v1373, 0
        %v1376 = vxor.u32 %v1371, 2147483648
        %v1377 = vsel %vm1375, %v1370, %v1376
        %vm1378 = vcmp.eq.s32.totalorder %v1373, 2
        %v1379 = vxor.u32 %v1370, 2147483648
        %v1380 = vsel %vm1378, %v1379, %v1371
        %v1381 = vsel %vm1374, %v1377, %v1380
        %v1382 = vsel %vm1372, nan, %v1381
        %v1383 = vand.u32 2147483647, %v428
        %vm1384 = vcmp.le.f32.partialorder %v1383, 0.7853982
        %vm1385 = vcmp.lt.s32.totalorder %v428, 0
        %v1386 = vand.u32 %v428, 2139095040
        %v1387 = vshrl.u32 %v1386, 23
        %v1388 = vsub.s32 %v1387, 127
        %v1389 = vand.u32 2147483647, %v428
        %v1390 = vand.u32 %v1389, 8388607
        %v1391 = vor.u32 %v1390, 8388608
        %v1392 = vsub.s32 0, %v1391
        %v1393 = vadd.s32 %v1388, 1
        %vm1394 = vcmp.gt.s32.totalorder %v1393, 0
        %v1395 = vsel %vm1394, %v1393, 0
        %v1396 = vshrl.u32 %v1395, 5
        %v1397 = vand.u32 %v1395, 31
        %v1398 = vsub.s32 32, %v1397
        %v1399 = vshrl.u32 683565275, %v1398
        %v1400 = vshll.u32 683565275, %v1397
        %v1401 = vshrl.u32 2475754826, %v1398
        %v1402 = vor.u32 %v1400, %v1401
        %v1403 = vshll.u32 2475754826, %v1397
        %v1404 = vshrl.u32 2131351028, %v1398
        %v1405 = vor.u32 %v1403, %v1404
        %v1406 = vshll.u32 2131351028, %v1397
        %v1407 = vshrl.u32 2102212464, %v1398
        %v1408 = vor.u32 %v1406, %v1407
        %v1409 = vshll.u32 2102212464, %v1397
        %v1410 = vshrl.u32 920167782, %v1398
        %v1411 = vor.u32 %v1409, %v1410
        %v1412 = vshll.u32 920167782, %v1397
        %v1413 = vshrl.u32 1326507024, %v1398
        %v1414 = vor.u32 %v1412, %v1413
        %vm1415 = vcmp.lt.s32.totalorder %v1396, 1
        %vm1416 = vcmp.lt.s32.totalorder %v1396, 2
        %vm1417 = vcmp.lt.s32.totalorder %v1396, 3
        %vm1418 = vcmp.lt.s32.totalorder %v1396, 4
        %v1419 = vsel %vm1415, %v1399, %v1402
        %v1420 = vsel %vm1418, %v1408, 2102212464
        %v1421 = vsel %vm1417, %v1405, %v1420
        %v1422 = vsel %vm1416, %v1419, %v1421
        %v1423 = vsel %vm1415, %v1402, %v1405
        %v1424 = vsel %vm1418, %v1411, 920167782
        %v1425 = vsel %vm1417, %v1408, %v1424
        %v1426 = vsel %vm1416, %v1423, %v1425
        %v1427 = vsel %vm1415, %v1405, %v1408
        %v1428 = vsel %vm1418, %v1414, 1326507024
        %v1429 = vsel %vm1417, %v1411, %v1428
        %v1430 = vsel %vm1416, %v1427, %v1429
        %v1431 = vshll.u32 %v1391, 8
        %v1432 = vmul.u32.u64.compose %v1431, %v1430
        %v1433 = vextract.low.u32 %v1432
        %v1434 = vextract.high.u32 %v1432
        %v1435 = vmul.u32.u64.compose %v1431, %v1426
        %v1436 = vextract.low.u32 %v1435
        %v1437 = vextract.high.u32 %v1435
        %v1438 = vmul.u32 %v1431, %v1422
        %v1439 = vadd.s32 %v1434, %v1436
        %vm1440 = vc.u32 %v1434, %v1436
        %v1441 = vadd.s32 %v1437, 1
        %v1442 = vsel %vm1440, %v1441, %v1437
        %v1443 = vadd.s32 %v1438, %v1442
        %v1444 = vadd.s32 %v1443, 536870912
        %v1445 = vshrl.u32 %v1444, 30
        %v1446 = vshll.u32 %v1445, 30
        %v1447 = vsub.s32 %v1443, %v1446
        %vm1448 = vcmp.lt.s32.totalorder %v1447, 0
        %v1449 = vsub.s32 0, %v1447
        %v1450 = vsel %vm1448, %v1449, %v1447
        %v1451 = vclz %v1450
        %v1452 = vsub.s32 %v1451, 2
        %vm1453 = vcmp.gt.s32.totalorder 0, %v1452
        %v1454 = vsel %vm1453, 0, %v1452
        %v1455 = vsub.s32 32, %v1454
        %v1456 = vshll.u32 %v1447, %v1454
        %v1457 = vshrl.u32 %v1439, %v1455
        %v1458 = vor.u32 %v1456, %v1457
        %v1459 = vsub.s32 4294967266, %v1454
        %v1460 = vadd.s32 %v1459, 127
        %v1461 = vshll.u32 %v1460, 23
        %v1462 = vor.u32 4788187, %v1461
        %v1463 = vand.u32 2147483647, %v1462
        %v1465 = vcvt.s32.f32 %v1458
        %v1466 = vmul.f32 %v1465, %v1463
        %v1467 = vxor.u32 %v1466, 2147483648
        %v1468 = vsel %vm1385, %v1467, %v1466
        %v1469 = vsub.s32 4, %v1445
        %v1470 = vsel %vm1385, %v1469, %v1445
        %v1471 = vsel %vm1384, %v428, %v1468
        %v1472 = vsel %vm1384, 0, %v1470
        %v1473 = vcosq.f32.pop %v1471
        %v1474 = vsinq.f32.pop %v1471
        %vm1475 = vweird.f32 %v428
        %v1476 = vand.u32 %v1472, 3
        %vm1477 = vcmp.lt.s32.totalorder %v1476, 2
        %vm1478 = vcmp.eq.s32.totalorder %v1476, 0
        %v1479 = vxor.u32 %v1474, 2147483648
        %v1480 = vsel %vm1478, %v1473, %v1479
        %vm1481 = vcmp.eq.s32.totalorder %v1476, 2
        %v1482 = vxor.u32 %v1473, 2147483648
        %v1483 = vsel %vm1481, %v1482, %v1474
        %v1484 = vsel %vm1477, %v1480, %v1483
        %v1485 = vsel %vm1475, nan, %v1484
        %v1486 = vand.u32 2147483647, %v432
        %vm1487 = vcmp.le.f32.partialorder %v1486, 0.7853982
        %vm1488 = vcmp.lt.s32.totalorder %v432, 0
        %v1489 = vand.u32 %v432, 2139095040
        %v1490 = vshrl.u32 %v1489, 23
        %v1491 = vsub.s32 %v1490, 127
        %v1492 = vand.u32 2147483647, %v432
        %v1493 = vand.u32 %v1492, 8388607
        %v1494 = vor.u32 %v1493, 8388608
        %v1495 = vsub.s32 0, %v1494
        %v1496 = vadd.s32 %v1491, 1
        %vm1497 = vcmp.gt.s32.totalorder %v1496, 0
        %v1498 = vsel %vm1497, %v1496, 0
        %v1499 = vshrl.u32 %v1498, 5
        %v1500 = vand.u32 %v1498, 31
        %v1501 = vsub.s32 32, %v1500
        %v1502 = vshrl.u32 683565275, %v1501
        %v1503 = vshll.u32 683565275, %v1500
        %v1504 = vshrl.u32 2475754826, %v1501
        %v1505 = vor.u32 %v1503, %v1504
        %v1506 = vshll.u32 2475754826, %v1500
        %v1507 = vshrl.u32 2131351028, %v1501
        %v1508 = vor.u32 %v1506, %v1507
        %v1509 = vshll.u32 2131351028, %v1500
        %v1510 = vshrl.u32 2102212464, %v1501
        %v1511 = vor.u32 %v1509, %v1510
        %v1512 = vshll.u32 2102212464, %v1500
        %v1513 = vshrl.u32 920167782, %v1501
        %v1514 = vor.u32 %v1512, %v1513
        %v1515 = vshll.u32 920167782, %v1500
        %v1516 = vshrl.u32 1326507024, %v1501
        %v1517 = vor.u32 %v1515, %v1516
        %vm1518 = vcmp.lt.s32.totalorder %v1499, 1
        %vm1519 = vcmp.lt.s32.totalorder %v1499, 2
        %vm1520 = vcmp.lt.s32.totalorder %v1499, 3
        %vm1521 = vcmp.lt.s32.totalorder %v1499, 4
        %v1522 = vsel %vm1518, %v1502, %v1505
        %v1523 = vsel %vm1521, %v1511, 2102212464
        %v1524 = vsel %vm1520, %v1508, %v1523
        %v1525 = vsel %vm1519, %v1522, %v1524
        %v1526 = vsel %vm1518, %v1505, %v1508
        %v1527 = vsel %vm1521, %v1514, 920167782
        %v1528 = vsel %vm1520, %v1511, %v1527
        %v1529 = vsel %vm1519, %v1526, %v1528
        %v1530 = vsel %vm1518, %v1508, %v1511
        %v1531 = vsel %vm1521, %v1517, 1326507024
        %v1532 = vsel %vm1520, %v1514, %v1531
        %v1533 = vsel %vm1519, %v1530, %v1532
        %v1534 = vshll.u32 %v1494, 8
        %v1535 = vmul.u32.u64.compose %v1534, %v1533
        %v1536 = vextract.low.u32 %v1535
        %v1537 = vextract.high.u32 %v1535
        %v1538 = vmul.u32.u64.compose %v1534, %v1529
        %v1539 = vextract.low.u32 %v1538
        %v1540 = vextract.high.u32 %v1538
        %v1541 = vmul.u32 %v1534, %v1525
        %v1542 = vadd.s32 %v1537, %v1539
        %vm1543 = vc.u32 %v1537, %v1539
        %v1544 = vadd.s32 %v1540, 1
        %v1545 = vsel %vm1543, %v1544, %v1540
        %v1546 = vadd.s32 %v1541, %v1545
        %v1547 = vadd.s32 %v1546, 536870912
        %v1548 = vshrl.u32 %v1547, 30
        %v1549 = vshll.u32 %v1548, 30
        %v1550 = vsub.s32 %v1546, %v1549
        %vm1551 = vcmp.lt.s32.totalorder %v1550, 0
        %v1552 = vsub.s32 0, %v1550
        %v1553 = vsel %vm1551, %v1552, %v1550
        %v1554 = vclz %v1553
        %v1555 = vsub.s32 %v1554, 2
        %vm1556 = vcmp.gt.s32.totalorder 0, %v1555
        %v1557 = vsel %vm1556, 0, %v1555
        %v1558 = vsub.s32 32, %v1557
        %v1559 = vshll.u32 %v1550, %v1557
        %v1560 = vshrl.u32 %v1542, %v1558
        %v1561 = vor.u32 %v1559, %v1560
        %v1562 = vsub.s32 4294967266, %v1557
        %v1563 = vadd.s32 %v1562, 127
        %v1564 = vshll.u32 %v1563, 23
        %v1565 = vor.u32 4788187, %v1564
        %v1566 = vand.u32 2147483647, %v1565
        %v1568 = vcvt.s32.f32 %v1561
        %v1569 = vmul.f32 %v1568, %v1566
        %v1570 = vxor.u32 %v1569, 2147483648
        %v1571 = vsel %vm1488, %v1570, %v1569
        %v1572 = vsub.s32 4, %v1548
        %v1573 = vsel %vm1488, %v1572, %v1548
        %v1574 = vsel %vm1487, %v432, %v1571
        %v1575 = vsel %vm1487, 0, %v1573
        %v1576 = vcosq.f32.pop %v1574
        %v1577 = vsinq.f32.pop %v1574
        %vm1578 = vweird.f32 %v432
        %v1579 = vand.u32 %v1575, 3
        %vm1580 = vcmp.lt.s32.totalorder %v1579, 2
        %vm1581 = vcmp.eq.s32.totalorder %v1579, 0
        %v1582 = vxor.u32 %v1577, 2147483648
        %v1583 = vsel %vm1581, %v1576, %v1582
        %vm1584 = vcmp.eq.s32.totalorder %v1579, 2
        %v1585 = vxor.u32 %v1576, 2147483648
        %v1586 = vsel %vm1584, %v1585, %v1577
        %v1587 = vsel %vm1580, %v1583, %v1586
        %v1588 = vsel %vm1578, nan, %v1587
        %v1589 = vand.u32 2147483647, %v434
        %vm1590 = vcmp.le.f32.partialorder %v1589, 0.7853982
        %vm1591 = vcmp.lt.s32.totalorder %v434, 0
        %v1592 = vand.u32 %v434, 2139095040
        %v1593 = vshrl.u32 %v1592, 23
        %v1594 = vsub.s32 %v1593, 127
        %v1595 = vand.u32 2147483647, %v434
        %v1596 = vand.u32 %v1595, 8388607
        %v1597 = vor.u32 %v1596, 8388608
        %v1598 = vsub.s32 0, %v1597
        %v1599 = vadd.s32 %v1594, 1
        %vm1600 = vcmp.gt.s32.totalorder %v1599, 0
        %v1601 = vsel %vm1600, %v1599, 0
        %v1602 = vshrl.u32 %v1601, 5
        %v1603 = vand.u32 %v1601, 31
        %v1604 = vsub.s32 32, %v1603
        %v1605 = vshrl.u32 683565275, %v1604
        %v1606 = vshll.u32 683565275, %v1603
        %v1607 = vshrl.u32 2475754826, %v1604
        %v1608 = vor.u32 %v1606, %v1607
        %v1609 = vshll.u32 2475754826, %v1603
        %v1610 = vshrl.u32 2131351028, %v1604
        %v1611 = vor.u32 %v1609, %v1610
        %v1612 = vshll.u32 2131351028, %v1603
        %v1613 = vshrl.u32 2102212464, %v1604
        %v1614 = vor.u32 %v1612, %v1613
        %v1615 = vshll.u32 2102212464, %v1603
        %v1616 = vshrl.u32 920167782, %v1604
        %v1617 = vor.u32 %v1615, %v1616
        %v1618 = vshll.u32 920167782, %v1603
        %v1619 = vshrl.u32 1326507024, %v1604
        %v1620 = vor.u32 %v1618, %v1619
        %vm1621 = vcmp.lt.s32.totalorder %v1602, 1
        %vm1622 = vcmp.lt.s32.totalorder %v1602, 2
        %vm1623 = vcmp.lt.s32.totalorder %v1602, 3
        %vm1624 = vcmp.lt.s32.totalorder %v1602, 4
        %v1625 = vsel %vm1621, %v1605, %v1608
        %v1626 = vsel %vm1624, %v1614, 2102212464
        %v1627 = vsel %vm1623, %v1611, %v1626
        %v1628 = vsel %vm1622, %v1625, %v1627
        %v1629 = vsel %vm1621, %v1608, %v1611
        %v1630 = vsel %vm1624, %v1617, 920167782
        %v1631 = vsel %vm1623, %v1614, %v1630
        %v1632 = vsel %vm1622, %v1629, %v1631
        %v1633 = vsel %vm1621, %v1611, %v1614
        %v1634 = vsel %vm1624, %v1620, 1326507024
        %v1635 = vsel %vm1623, %v1617, %v1634
        %v1636 = vsel %vm1622, %v1633, %v1635
        %v1637 = vshll.u32 %v1597, 8
        %v1638 = vmul.u32.u64.compose %v1637, %v1636
        %v1639 = vextract.low.u32 %v1638
        %v1640 = vextract.high.u32 %v1638
        %v1641 = vmul.u32.u64.compose %v1637, %v1632
        %v1642 = vextract.low.u32 %v1641
        %v1643 = vextract.high.u32 %v1641
        %v1644 = vmul.u32 %v1637, %v1628
        %v1645 = vadd.s32 %v1640, %v1642
        %vm1646 = vc.u32 %v1640, %v1642
        %v1647 = vadd.s32 %v1643, 1
        %v1648 = vsel %vm1646, %v1647, %v1643
        %v1649 = vadd.s32 %v1644, %v1648
        %v1650 = vadd.s32 %v1649, 536870912
        %v1651 = vshrl.u32 %v1650, 30
        %v1652 = vshll.u32 %v1651, 30
        %v1653 = vsub.s32 %v1649, %v1652
        %vm1654 = vcmp.lt.s32.totalorder %v1653, 0
        %v1655 = vsub.s32 0, %v1653
        %v1656 = vsel %vm1654, %v1655, %v1653
        %v1657 = vclz %v1656
        %v1658 = vsub.s32 %v1657, 2
        %vm1659 = vcmp.gt.s32.totalorder 0, %v1658
        %v1660 = vsel %vm1659, 0, %v1658
        %v1661 = vsub.s32 32, %v1660
        %v1662 = vshll.u32 %v1653, %v1660
        %v1663 = vshrl.u32 %v1645, %v1661
        %v1664 = vor.u32 %v1662, %v1663
        %v1665 = vsub.s32 4294967266, %v1660
        %v1666 = vadd.s32 %v1665, 127
        %v1667 = vshll.u32 %v1666, 23
        %v1668 = vor.u32 4788187, %v1667
        %v1669 = vand.u32 2147483647, %v1668
        %v1671 = vcvt.s32.f32 %v1664
        %v1672 = vmul.f32 %v1671, %v1669
        %v1673 = vxor.u32 %v1672, 2147483648
        %v1674 = vsel %vm1591, %v1673, %v1672
        %v1675 = vsub.s32 4, %v1651
        %v1676 = vsel %vm1591, %v1675, %v1651
        %v1677 = vsel %vm1590, %v434, %v1674
        %v1678 = vsel %vm1590, 0, %v1676
        %v1679 = vcosq.f32.pop %v1677
        %v1680 = vsinq.f32.pop %v1677
        %vm1681 = vweird.f32 %v434
        %v1682 = vand.u32 %v1678, 3
        %vm1683 = vcmp.lt.s32.totalorder %v1682, 2
        %vm1684 = vcmp.eq.s32.totalorder %v1682, 0
        %v1685 = vxor.u32 %v1680, 2147483648
        %v1686 = vsel %vm1684, %v1679, %v1685
        %vm1687 = vcmp.eq.s32.totalorder %v1682, 2
        %v1688 = vxor.u32 %v1679, 2147483648
        %v1689 = vsel %vm1687, %v1688, %v1680
        %v1690 = vsel %vm1683, %v1686, %v1689
        %v1691 = vsel %vm1681, nan, %v1690
        %v1692 = vand.u32 2147483647, %v438
        %vm1693 = vcmp.le.f32.partialorder %v1692, 0.7853982
        %vm1694 = vcmp.lt.s32.totalorder %v438, 0
        %v1695 = vand.u32 %v438, 2139095040
        %v1696 = vshrl.u32 %v1695, 23
        %v1697 = vsub.s32 %v1696, 127
        %v1698 = vand.u32 2147483647, %v438
        %v1699 = vand.u32 %v1698, 8388607
        %v1700 = vor.u32 %v1699, 8388608
        %v1701 = vsub.s32 0, %v1700
        %v1702 = vadd.s32 %v1697, 1
        %vm1703 = vcmp.gt.s32.totalorder %v1702, 0
        %v1704 = vsel %vm1703, %v1702, 0
        %v1705 = vshrl.u32 %v1704, 5
        %v1706 = vand.u32 %v1704, 31
        %v1707 = vsub.s32 32, %v1706
        %v1708 = vshrl.u32 683565275, %v1707
        %v1709 = vshll.u32 683565275, %v1706
        %v1710 = vshrl.u32 2475754826, %v1707
        %v1711 = vor.u32 %v1709, %v1710
        %v1712 = vshll.u32 2475754826, %v1706
        %v1713 = vshrl.u32 2131351028, %v1707
        %v1714 = vor.u32 %v1712, %v1713
        %v1715 = vshll.u32 2131351028, %v1706
        %v1716 = vshrl.u32 2102212464, %v1707
        %v1717 = vor.u32 %v1715, %v1716
        %v1718 = vshll.u32 2102212464, %v1706
        %v1719 = vshrl.u32 920167782, %v1707
        %v1720 = vor.u32 %v1718, %v1719
        %v1721 = vshll.u32 920167782, %v1706
        %v1722 = vshrl.u32 1326507024, %v1707
        %v1723 = vor.u32 %v1721, %v1722
        %vm1724 = vcmp.lt.s32.totalorder %v1705, 1
        %vm1725 = vcmp.lt.s32.totalorder %v1705, 2
        %vm1726 = vcmp.lt.s32.totalorder %v1705, 3
        %vm1727 = vcmp.lt.s32.totalorder %v1705, 4
        %v1728 = vsel %vm1724, %v1708, %v1711
        %v1729 = vsel %vm1727, %v1717, 2102212464
        %v1730 = vsel %vm1726, %v1714, %v1729
        %v1731 = vsel %vm1725, %v1728, %v1730
        %v1732 = vsel %vm1724, %v1711, %v1714
        %v1733 = vsel %vm1727, %v1720, 920167782
        %v1734 = vsel %vm1726, %v1717, %v1733
        %v1735 = vsel %vm1725, %v1732, %v1734
        %v1736 = vsel %vm1724, %v1714, %v1717
        %v1737 = vsel %vm1727, %v1723, 1326507024
        %v1738 = vsel %vm1726, %v1720, %v1737
        %v1739 = vsel %vm1725, %v1736, %v1738
        %v1740 = vshll.u32 %v1700, 8
        %v1741 = vmul.u32.u64.compose %v1740, %v1739
        %v1742 = vextract.low.u32 %v1741
        %v1743 = vextract.high.u32 %v1741
        %v1744 = vmul.u32.u64.compose %v1740, %v1735
        %v1745 = vextract.low.u32 %v1744
        %v1746 = vextract.high.u32 %v1744
        %v1747 = vmul.u32 %v1740, %v1731
        %v1748 = vadd.s32 %v1743, %v1745
        %vm1749 = vc.u32 %v1743, %v1745
        %v1750 = vadd.s32 %v1746, 1
        %v1751 = vsel %vm1749, %v1750, %v1746
        %v1752 = vadd.s32 %v1747, %v1751
        %v1753 = vadd.s32 %v1752, 536870912
        %v1754 = vshrl.u32 %v1753, 30
        %v1755 = vshll.u32 %v1754, 30
        %v1756 = vsub.s32 %v1752, %v1755
        %vm1757 = vcmp.lt.s32.totalorder %v1756, 0
        %v1758 = vsub.s32 0, %v1756
        %v1759 = vsel %vm1757, %v1758, %v1756
        %v1760 = vclz %v1759
        %v1761 = vsub.s32 %v1760, 2
        %vm1762 = vcmp.gt.s32.totalorder 0, %v1761
        %v1763 = vsel %vm1762, 0, %v1761
        %v1764 = vsub.s32 32, %v1763
        %v1765 = vshll.u32 %v1756, %v1763
        %v1766 = vshrl.u32 %v1748, %v1764
        %v1767 = vor.u32 %v1765, %v1766
        %v1768 = vsub.s32 4294967266, %v1763
        %v1769 = vadd.s32 %v1768, 127
        %v1770 = vshll.u32 %v1769, 23
        %v1771 = vor.u32 4788187, %v1770
        %v1772 = vand.u32 2147483647, %v1771
        %v1774 = vcvt.s32.f32 %v1767
        %v1775 = vmul.f32 %v1774, %v1772
        %v1776 = vxor.u32 %v1775, 2147483648
        %v1777 = vsel %vm1694, %v1776, %v1775
        %v1778 = vsub.s32 4, %v1754
        %v1779 = vsel %vm1694, %v1778, %v1754
        %v1780 = vsel %vm1693, %v438, %v1777
        %v1781 = vsel %vm1693, 0, %v1779
        %v1782 = vcosq.f32.pop %v1780
        %v1783 = vsinq.f32.pop %v1780
        %vm1784 = vweird.f32 %v438
        %v1785 = vand.u32 %v1781, 3
        %vm1786 = vcmp.lt.s32.totalorder %v1785, 2
        %vm1787 = vcmp.eq.s32.totalorder %v1785, 0
        %v1788 = vxor.u32 %v1783, 2147483648
        %v1789 = vsel %vm1787, %v1782, %v1788
        %vm1790 = vcmp.eq.s32.totalorder %v1785, 2
        %v1791 = vxor.u32 %v1782, 2147483648
        %v1792 = vsel %vm1790, %v1791, %v1783
        %v1793 = vsel %vm1786, %v1789, %v1792
        %v1794 = vsel %vm1784, nan, %v1793
        %v1795 = vand.u32 2147483647, %v440
        %vm1796 = vcmp.le.f32.partialorder %v1795, 0.7853982
        %vm1797 = vcmp.lt.s32.totalorder %v440, 0
        %v1798 = vand.u32 %v440, 2139095040
        %v1799 = vshrl.u32 %v1798, 23
        %v1800 = vsub.s32 %v1799, 127
        %v1801 = vand.u32 2147483647, %v440
        %v1802 = vand.u32 %v1801, 8388607
        %v1803 = vor.u32 %v1802, 8388608
        %v1804 = vsub.s32 0, %v1803
        %v1805 = vadd.s32 %v1800, 1
        %vm1806 = vcmp.gt.s32.totalorder %v1805, 0
        %v1807 = vsel %vm1806, %v1805, 0
        %v1808 = vshrl.u32 %v1807, 5
        %v1809 = vand.u32 %v1807, 31
        %v1810 = vsub.s32 32, %v1809
        %v1811 = vshrl.u32 683565275, %v1810
        %v1812 = vshll.u32 683565275, %v1809
        %v1813 = vshrl.u32 2475754826, %v1810
        %v1814 = vor.u32 %v1812, %v1813
        %v1815 = vshll.u32 2475754826, %v1809
        %v1816 = vshrl.u32 2131351028, %v1810
        %v1817 = vor.u32 %v1815, %v1816
        %v1818 = vshll.u32 2131351028, %v1809
        %v1819 = vshrl.u32 2102212464, %v1810
        %v1820 = vor.u32 %v1818, %v1819
        %v1821 = vshll.u32 2102212464, %v1809
        %v1822 = vshrl.u32 920167782, %v1810
        %v1823 = vor.u32 %v1821, %v1822
        %v1824 = vshll.u32 920167782, %v1809
        %v1825 = vshrl.u32 1326507024, %v1810
        %v1826 = vor.u32 %v1824, %v1825
        %vm1827 = vcmp.lt.s32.totalorder %v1808, 1
        %vm1828 = vcmp.lt.s32.totalorder %v1808, 2
        %vm1829 = vcmp.lt.s32.totalorder %v1808, 3
        %vm1830 = vcmp.lt.s32.totalorder %v1808, 4
        %v1831 = vsel %vm1827, %v1811, %v1814
        %v1832 = vsel %vm1830, %v1820, 2102212464
        %v1833 = vsel %vm1829, %v1817, %v1832
        %v1834 = vsel %vm1828, %v1831, %v1833
        %v1835 = vsel %vm1827, %v1814, %v1817
        %v1836 = vsel %vm1830, %v1823, 920167782
        %v1837 = vsel %vm1829, %v1820, %v1836
        %v1838 = vsel %vm1828, %v1835, %v1837
        %v1839 = vsel %vm1827, %v1817, %v1820
        %v1840 = vsel %vm1830, %v1826, 1326507024
        %v1841 = vsel %vm1829, %v1823, %v1840
        %v1842 = vsel %vm1828, %v1839, %v1841
        %v1843 = vshll.u32 %v1803, 8
        %v1844 = vmul.u32.u64.compose %v1843, %v1842
        %v1845 = vextract.low.u32 %v1844
        %v1846 = vextract.high.u32 %v1844
        %v1847 = vmul.u32.u64.compose %v1843, %v1838
        %v1848 = vextract.low.u32 %v1847
        %v1849 = vextract.high.u32 %v1847
        %v1850 = vmul.u32 %v1843, %v1834
        %v1851 = vadd.s32 %v1846, %v1848
        %vm1852 = vc.u32 %v1846, %v1848
        %v1853 = vadd.s32 %v1849, 1
        %v1854 = vsel %vm1852, %v1853, %v1849
        %v1855 = vadd.s32 %v1850, %v1854
        %v1856 = vadd.s32 %v1855, 536870912
        %v1857 = vshrl.u32 %v1856, 30
        %v1858 = vshll.u32 %v1857, 30
        %v1859 = vsub.s32 %v1855, %v1858
        %vm1860 = vcmp.lt.s32.totalorder %v1859, 0
        %v1861 = vsub.s32 0, %v1859
        %v1862 = vsel %vm1860, %v1861, %v1859
        %v1863 = vclz %v1862
        %v1864 = vsub.s32 %v1863, 2
        %vm1865 = vcmp.gt.s32.totalorder 0, %v1864
        %v1866 = vsel %vm1865, 0, %v1864
        %v1867 = vsub.s32 32, %v1866
        %v1868 = vshll.u32 %v1859, %v1866
        %v1869 = vshrl.u32 %v1851, %v1867
        %v1870 = vor.u32 %v1868, %v1869
        %v1871 = vsub.s32 4294967266, %v1866
        %v1872 = vadd.s32 %v1871, 127
        %v1873 = vshll.u32 %v1872, 23
        %v1874 = vor.u32 4788187, %v1873
        %v1875 = vand.u32 2147483647, %v1874
        %v1877 = vcvt.s32.f32 %v1870
        %v1878 = vmul.f32 %v1877, %v1875
        %v1879 = vxor.u32 %v1878, 2147483648
        %v1880 = vsel %vm1797, %v1879, %v1878
        %v1881 = vsub.s32 4, %v1857
        %v1882 = vsel %vm1797, %v1881, %v1857
        %v1883 = vsel %vm1796, %v440, %v1880
        %v1884 = vsel %vm1796, 0, %v1882
        %v1885 = vcosq.f32.pop %v1883
        %v1886 = vsinq.f32.pop %v1883
        %vm1887 = vweird.f32 %v440
        %v1888 = vand.u32 %v1884, 3
        %vm1889 = vcmp.lt.s32.totalorder %v1888, 2
        %vm1890 = vcmp.eq.s32.totalorder %v1888, 0
        %v1891 = vxor.u32 %v1886, 2147483648
        %v1892 = vsel %vm1890, %v1885, %v1891
        %vm1893 = vcmp.eq.s32.totalorder %v1888, 2
        %v1894 = vxor.u32 %v1885, 2147483648
        %v1895 = vsel %vm1893, %v1894, %v1886
        %v1896 = vsel %vm1889, %v1892, %v1895
        %v1897 = vsel %vm1887, nan, %v1896
        %v1898 = vand.u32 2147483647, %v444
        %vm1899 = vcmp.le.f32.partialorder %v1898, 0.7853982
        %vm1900 = vcmp.lt.s32.totalorder %v444, 0
        %v1901 = vand.u32 %v444, 2139095040
        %v1902 = vshrl.u32 %v1901, 23
        %v1903 = vsub.s32 %v1902, 127
        %v1904 = vand.u32 2147483647, %v444
        %v1905 = vand.u32 %v1904, 8388607
        %v1906 = vor.u32 %v1905, 8388608
        %v1907 = vsub.s32 0, %v1906
        %v1908 = vadd.s32 %v1903, 1
        %vm1909 = vcmp.gt.s32.totalorder %v1908, 0
        %v1910 = vsel %vm1909, %v1908, 0
        %v1911 = vshrl.u32 %v1910, 5
        %v1912 = vand.u32 %v1910, 31
        %v1913 = vsub.s32 32, %v1912
        %v1914 = vshrl.u32 683565275, %v1913
        %v1915 = vshll.u32 683565275, %v1912
        %v1916 = vshrl.u32 2475754826, %v1913
        %v1917 = vor.u32 %v1915, %v1916
        %v1918 = vshll.u32 2475754826, %v1912
        %v1919 = vshrl.u32 2131351028, %v1913
        %v1920 = vor.u32 %v1918, %v1919
        %v1921 = vshll.u32 2131351028, %v1912
        %v1922 = vshrl.u32 2102212464, %v1913
        %v1923 = vor.u32 %v1921, %v1922
        %v1924 = vshll.u32 2102212464, %v1912
        %v1925 = vshrl.u32 920167782, %v1913
        %v1926 = vor.u32 %v1924, %v1925
        %v1927 = vshll.u32 920167782, %v1912
        %v1928 = vshrl.u32 1326507024, %v1913
        %v1929 = vor.u32 %v1927, %v1928
        %vm1930 = vcmp.lt.s32.totalorder %v1911, 1
        %vm1931 = vcmp.lt.s32.totalorder %v1911, 2
        %vm1932 = vcmp.lt.s32.totalorder %v1911, 3
        %vm1933 = vcmp.lt.s32.totalorder %v1911, 4
        %v1934 = vsel %vm1930, %v1914, %v1917
        %v1935 = vsel %vm1933, %v1923, 2102212464
        %v1936 = vsel %vm1932, %v1920, %v1935
        %v1937 = vsel %vm1931, %v1934, %v1936
        %v1938 = vsel %vm1930, %v1917, %v1920
        %v1939 = vsel %vm1933, %v1926, 920167782
        %v1940 = vsel %vm1932, %v1923, %v1939
        %v1941 = vsel %vm1931, %v1938, %v1940
        %v1942 = vsel %vm1930, %v1920, %v1923
        %v1943 = vsel %vm1933, %v1929, 1326507024
        %v1944 = vsel %vm1932, %v1926, %v1943
        %v1945 = vsel %vm1931, %v1942, %v1944
        %v1946 = vshll.u32 %v1906, 8
        %v1947 = vmul.u32.u64.compose %v1946, %v1945
        %v1948 = vextract.low.u32 %v1947
        %v1949 = vextract.high.u32 %v1947
        %v1950 = vmul.u32.u64.compose %v1946, %v1941
        %v1951 = vextract.low.u32 %v1950
        %v1952 = vextract.high.u32 %v1950
        %v1953 = vmul.u32 %v1946, %v1937
        %v1954 = vadd.s32 %v1949, %v1951
        %vm1955 = vc.u32 %v1949, %v1951
        %v1956 = vadd.s32 %v1952, 1
        %v1957 = vsel %vm1955, %v1956, %v1952
        %v1958 = vadd.s32 %v1953, %v1957
        %v1959 = vadd.s32 %v1958, 536870912
        %v1960 = vshrl.u32 %v1959, 30
        %v1961 = vshll.u32 %v1960, 30
        %v1962 = vsub.s32 %v1958, %v1961
        %vm1963 = vcmp.lt.s32.totalorder %v1962, 0
        %v1964 = vsub.s32 0, %v1962
        %v1965 = vsel %vm1963, %v1964, %v1962
        %v1966 = vclz %v1965
        %v1967 = vsub.s32 %v1966, 2
        %vm1968 = vcmp.gt.s32.totalorder 0, %v1967
        %v1969 = vsel %vm1968, 0, %v1967
        %v1970 = vsub.s32 32, %v1969
        %v1971 = vshll.u32 %v1962, %v1969
        %v1972 = vshrl.u32 %v1954, %v1970
        %v1973 = vor.u32 %v1971, %v1972
        %v1974 = vsub.s32 4294967266, %v1969
        %v1975 = vadd.s32 %v1974, 127
        %v1976 = vshll.u32 %v1975, 23
        %v1977 = vor.u32 4788187, %v1976
        %v1978 = vand.u32 2147483647, %v1977
        %v1980 = vcvt.s32.f32 %v1973
        %v1981 = vmul.f32 %v1980, %v1978
        %v1982 = vxor.u32 %v1981, 2147483648
        %v1983 = vsel %vm1900, %v1982, %v1981
        %v1984 = vsub.s32 4, %v1960
        %v1985 = vsel %vm1900, %v1984, %v1960
        %v1986 = vsel %vm1899, %v444, %v1983
        %v1987 = vsel %vm1899, 0, %v1985
        %v1988 = vcosq.f32.pop %v1986
        %v1989 = vsinq.f32.pop %v1986
        %vm1990 = vweird.f32 %v444
        %v1991 = vand.u32 %v1987, 3
        %vm1992 = vcmp.lt.s32.totalorder %v1991, 2
        %vm1993 = vcmp.eq.s32.totalorder %v1991, 0
        %v1994 = vxor.u32 %v1989, 2147483648
        %v1995 = vsel %vm1993, %v1988, %v1994
        %vm1996 = vcmp.eq.s32.totalorder %v1991, 2
        %v1997 = vxor.u32 %v1988, 2147483648
        %v1998 = vsel %vm1996, %v1997, %v1989
        %v1999 = vsel %vm1992, %v1995, %v1998
        %v2000 = vsel %vm1990, nan, %v1999
        %v2001 = vand.u32 2147483647, %v446
        %vm2002 = vcmp.le.f32.partialorder %v2001, 0.7853982
        %vm2003 = vcmp.lt.s32.totalorder %v446, 0
        %v2004 = vand.u32 %v446, 2139095040
        %v2005 = vshrl.u32 %v2004, 23
        %v2006 = vsub.s32 %v2005, 127
        %v2007 = vand.u32 2147483647, %v446
        %v2008 = vand.u32 %v2007, 8388607
        %v2009 = vor.u32 %v2008, 8388608
        %v2010 = vsub.s32 0, %v2009
        %v2011 = vadd.s32 %v2006, 1
        %vm2012 = vcmp.gt.s32.totalorder %v2011, 0
        %v2013 = vsel %vm2012, %v2011, 0
        %v2014 = vshrl.u32 %v2013, 5
        %v2015 = vand.u32 %v2013, 31
        %v2016 = vsub.s32 32, %v2015
        %v2017 = vshrl.u32 683565275, %v2016
        %v2018 = vshll.u32 683565275, %v2015
        %v2019 = vshrl.u32 2475754826, %v2016
        %v2020 = vor.u32 %v2018, %v2019
        %v2021 = vshll.u32 2475754826, %v2015
        %v2022 = vshrl.u32 2131351028, %v2016
        %v2023 = vor.u32 %v2021, %v2022
        %v2024 = vshll.u32 2131351028, %v2015
        %v2025 = vshrl.u32 2102212464, %v2016
        %v2026 = vor.u32 %v2024, %v2025
        %v2027 = vshll.u32 2102212464, %v2015
        %v2028 = vshrl.u32 920167782, %v2016
        %v2029 = vor.u32 %v2027, %v2028
        %v2030 = vshll.u32 920167782, %v2015
        %v2031 = vshrl.u32 1326507024, %v2016
        %v2032 = vor.u32 %v2030, %v2031
        %vm2033 = vcmp.lt.s32.totalorder %v2014, 1
        %vm2034 = vcmp.lt.s32.totalorder %v2014, 2
        %vm2035 = vcmp.lt.s32.totalorder %v2014, 3
        %vm2036 = vcmp.lt.s32.totalorder %v2014, 4
        %v2037 = vsel %vm2033, %v2017, %v2020
        %v2038 = vsel %vm2036, %v2026, 2102212464
        %v2039 = vsel %vm2035, %v2023, %v2038
        %v2040 = vsel %vm2034, %v2037, %v2039
        %v2041 = vsel %vm2033, %v2020, %v2023
        %v2042 = vsel %vm2036, %v2029, 920167782
        %v2043 = vsel %vm2035, %v2026, %v2042
        %v2044 = vsel %vm2034, %v2041, %v2043
        %v2045 = vsel %vm2033, %v2023, %v2026
        %v2046 = vsel %vm2036, %v2032, 1326507024
        %v2047 = vsel %vm2035, %v2029, %v2046
        %v2048 = vsel %vm2034, %v2045, %v2047
        %v2049 = vshll.u32 %v2009, 8
        %v2050 = vmul.u32.u64.compose %v2049, %v2048
        %v2051 = vextract.low.u32 %v2050
        %v2052 = vextract.high.u32 %v2050
        %v2053 = vmul.u32.u64.compose %v2049, %v2044
        %v2054 = vextract.low.u32 %v2053
        %v2055 = vextract.high.u32 %v2053
        %v2056 = vmul.u32 %v2049, %v2040
        %v2057 = vadd.s32 %v2052, %v2054
        %vm2058 = vc.u32 %v2052, %v2054
        %v2059 = vadd.s32 %v2055, 1
        %v2060 = vsel %vm2058, %v2059, %v2055
        %v2061 = vadd.s32 %v2056, %v2060
        %v2062 = vadd.s32 %v2061, 536870912
        %v2063 = vshrl.u32 %v2062, 30
        %v2064 = vshll.u32 %v2063, 30
        %v2065 = vsub.s32 %v2061, %v2064
        %vm2066 = vcmp.lt.s32.totalorder %v2065, 0
        %v2067 = vsub.s32 0, %v2065
        %v2068 = vsel %vm2066, %v2067, %v2065
        %v2069 = vclz %v2068
        %v2070 = vsub.s32 %v2069, 2
        %vm2071 = vcmp.gt.s32.totalorder 0, %v2070
        %v2072 = vsel %vm2071, 0, %v2070
        %v2073 = vsub.s32 32, %v2072
        %v2074 = vshll.u32 %v2065, %v2072
        %v2075 = vshrl.u32 %v2057, %v2073
        %v2076 = vor.u32 %v2074, %v2075
        %v2077 = vsub.s32 4294967266, %v2072
        %v2078 = vadd.s32 %v2077, 127
        %v2079 = vshll.u32 %v2078, 23
        %v2080 = vor.u32 4788187, %v2079
        %v2081 = vand.u32 2147483647, %v2080
        %v2083 = vcvt.s32.f32 %v2076
        %v2084 = vmul.f32 %v2083, %v2081
        %v2085 = vxor.u32 %v2084, 2147483648
        %v2086 = vsel %vm2003, %v2085, %v2084
        %v2087 = vsub.s32 4, %v2063
        %v2088 = vsel %vm2003, %v2087, %v2063
        %v2089 = vsel %vm2002, %v446, %v2086
        %v2090 = vsel %vm2002, 0, %v2088
        %v2091 = vcosq.f32.pop %v2089
        %v2092 = vsinq.f32.pop %v2089
        %vm2093 = vweird.f32 %v446
        %v2094 = vand.u32 %v2090, 3
        %vm2095 = vcmp.lt.s32.totalorder %v2094, 2
        %vm2096 = vcmp.eq.s32.totalorder %v2094, 0
        %v2097 = vxor.u32 %v2092, 2147483648
        %v2098 = vsel %vm2096, %v2091, %v2097
        %vm2099 = vcmp.eq.s32.totalorder %v2094, 2
        %v2100 = vxor.u32 %v2091, 2147483648
        %v2101 = vsel %vm2099, %v2100, %v2092
        %v2102 = vsel %vm2095, %v2098, %v2101
        %v2103 = vsel %vm2093, nan, %v2102
        %v2104 = vld [vmem:[%s2] sm:$0xff]
        %v2105 = vld [vmem:[%s2 + $0x8] sm:$0xff]
        %v2106 = vld [vmem:[%s2 + $0x10] sm:$0xff]
        %v2107 = vld [vmem:[%s2 + $0x18] sm:$0xff]
        %v2108 = vld [vmem:[%s2 + $0x20] sm:$0xff]
        %v2109 = vld [vmem:[%s2 + $0x28] sm:$0xff]
        %v2110 = vld [vmem:[%s2 + $0x30] sm:$0xff]
        %v2111 = vld [vmem:[%s2 + $0x38] sm:$0xff]
        %v2112 = vld [vmem:[%s3] sm:$0xff]
        %v2113 = vld [vmem:[%s3 + $0x8] sm:$0xff]
        %v2114 = vld [vmem:[%s3 + $0x10] sm:$0xff]
        %v2115 = vld [vmem:[%s3 + $0x18] sm:$0xff]
        %v2116 = vld [vmem:[%s3 + $0x20] sm:$0xff]
        %v2117 = vld [vmem:[%s3 + $0x28] sm:$0xff]
        %v2118 = vld [vmem:[%s3 + $0x30] sm:$0xff]
        %v2119 = vld [vmem:[%s3 + $0x38] sm:$0xff]
        %vm2120 = vcmask 261120
        %v2122 = vsel %vm2120, %v2112, 0
        %v2125 = vsel %vm2120, %v2113, 0
        %v2128 = vsel %vm2120, %v2114, 0
        %v2131 = vsel %vm2120, %v2115, 0
        %v2134 = vsel %vm2120, %v2116, 0
        %v2137 = vsel %vm2120, %v2117, 0
        %v2140 = vsel %vm2120, %v2118, 0
        %v2143 = vsel %vm2120, %v2119, 0
        %2145 = vmatprep.subr.mxu0 %v1485
        %2146 = vmatpush1.msra.mxu0 %v1382
        %2147 = vmatprep.subr.mxu0 %v1691
        %2148 = vmatpush1.msra.mxu0 %v1588
        %2149 = vmatprep.subr.mxu0 %v1897
        %2150 = vmatpush1.msra.mxu0 %v1794
        %2151 = vmatprep.subr.mxu0 %v2103
        %2152 = vmatpush1.msra.mxu0 %v2000
        %2153 = vmatprep.subr.mxu0 0.0
        %2154 = vmatpush1.msra.mxu0 0.0
        %2155 = vmatprep.subr.mxu0 0.0
        %2156 = vmatpush1.msra.mxu0 0.0
        %2157 = vmatprep.subr.mxu0 0.0
        %2158 = vmatpush1.msra.mxu0 0.0
        %2159 = vmatprep.subr.mxu0 0.0
        %2160 = vmatpush1.msra.mxu0 0.0
        %2161 = vmatprep.subr.mxu0 0.0
        %2162 = vmatpush1.msra.mxu0 0.0
        %2163 = vmatprep.subr.mxu0 0.0
        %2164 = vmatpush1.msra.mxu0 0.0
        %2165 = vmatprep.subr.mxu0 0.0
        %2166 = vmatpush1.msra.mxu0 0.0
        %2167 = vmatprep.subr.mxu0 0.0
        %2168 = vmatpush1.msra.mxu0 0.0
        %2169 = vmatprep.subr.mxu0 0.0
        %2170 = vmatpush1.msra.mxu0 0.0
        %2171 = vmatprep.subr.mxu0 0.0
        %2172 = vmatpush1.msra.mxu0 0.0
        %2173 = vmatprep.subr.mxu0 0.0
        %2174 = vmatpush1.msra.mxu0 0.0
        %2175 = vmatprep.subr.mxu0 0.0
        %2176 = vmatpush1.msra.mxu0 0.0
        %2177 = vmatprep.subr.mxu0 0.0
        %2178 = vmatpush1.msra.mxu0 0.0
        %2179 = vmatprep.subr.mxu0 0.0
        %2180 = vmatpush1.msra.mxu0 0.0
        %2181 = vmatprep.subr.mxu0 0.0
        %2182 = vmatpush1.msra.mxu0 0.0
        %2183 = vmatprep.subr.mxu0 0.0
        %2184 = vmatpush1.msra.mxu0 0.0
        %2185 = vmatprep.subr.mxu0 0.0
        %2186 = vmatpush1.msra.mxu0 0.0
        %2187 = vmatprep.subr.mxu0 0.0
        %2188 = vmatpush1.msra.mxu0 0.0
        %2189 = vmatprep.subr.mxu0 0.0
        %2190 = vmatpush1.msra.mxu0 0.0
        %2191 = vmatprep.subr.mxu0 0.0
        %2192 = vmatpush1.msra.mxu0 0.0
        %2193 = vmatprep.subr.mxu0 0.0
        %2194 = vmatpush1.msra.mxu0 0.0
        %2195 = vmatprep.subr.mxu0 0.0
        %2196 = vmatpush1.msra.mxu0 0.0
        %2197 = vmatprep.subr.mxu0 0.0
        %2198 = vmatpush1.msra.mxu0 0.0
        %2199 = vmatprep.subr.mxu0 0.0
        %2200 = vmatpush1.msra.mxu0 0.0
        %2201 = vmatprep.subr.mxu0 0.0
        %2202 = vmatpush1.msra.mxu0 0.0
        %2203 = vmatprep.subr.mxu0 0.0
        %2204 = vmatpush1.msra.mxu0 0.0
        %2205 = vmatprep.subr.mxu0 0.0
        %2206 = vmatpush1.msra.mxu0 0.0
        %2207 = vmatprep.subr.mxu0 0.0
        %2208 = vmatpush1.msra.mxu0 0.0
        %2209 = vmatprep.mubr.f32.mxu0 0.0
        %2210 = vmatmul.mubr.f32.gmra.mrb[0].mxu0 %v2122
        %v2211 = vpop.f32.mrb[0].mxu0
        %v2212 = vadd.f32 0.0, %v2211
        %v2213 = vpop.f32.mrb[0].mxu0
        %v2214 = vadd.f32 0.0, %v2213
        %2215 = vmatprep.mubr.f32.mxu0 0.0
        %2216 = vmatmul.mubr.f32.gmra.mrb[0].mxu0 %v2125
        %v2217 = vpop.f32.mrb[0].mxu0
        %v2218 = vadd.f32 0.0, %v2217
        %v2219 = vpop.f32.mrb[0].mxu0
        %v2220 = vadd.f32 0.0, %v2219
        %2221 = vmatprep.mubr.f32.mxu0 0.0
        %2222 = vmatmul.mubr.f32.gmra.mrb[0].mxu0 %v2128
        %v2223 = vpop.f32.mrb[0].mxu0
        %v2224 = vadd.f32 0.0, %v2223
        %v2225 = vpop.f32.mrb[0].mxu0
        %v2226 = vadd.f32 0.0, %v2225
        %2227 = vmatprep.mubr.f32.mxu0 0.0
        %2228 = vmatmul.mubr.f32.gmra.mrb[0].mxu0 %v2131
        %v2229 = vpop.f32.mrb[0].mxu0
        %v2230 = vadd.f32 0.0, %v2229
        %v2231 = vpop.f32.mrb[0].mxu0
        %v2232 = vadd.f32 0.0, %v2231
        %2233 = vmatprep.mubr.f32.mxu0 0.0
        %2234 = vmatmul.mubr.f32.gmra.mrb[0].mxu0 %v2134
        %v2235 = vpop.f32.mrb[0].mxu0
        %v2236 = vadd.f32 0.0, %v2235
        %v2237 = vpop.f32.mrb[0].mxu0
        %v2238 = vadd.f32 0.0, %v2237
        %2239 = vmatprep.mubr.f32.mxu0 0.0
        %2240 = vmatmul.mubr.f32.gmra.mrb[0].mxu0 %v2137
        %v2241 = vpop.f32.mrb[0].mxu0
        %v2242 = vadd.f32 0.0, %v2241
        %v2243 = vpop.f32.mrb[0].mxu0
        %v2244 = vadd.f32 0.0, %v2243
        %2245 = vmatprep.mubr.f32.mxu0 0.0
        %2246 = vmatmul.mubr.f32.gmra.mrb[0].mxu0 %v2140
        %v2247 = vpop.f32.mrb[0].mxu0
        %v2248 = vadd.f32 0.0, %v2247
        %v2249 = vpop.f32.mrb[0].mxu0
        %v2250 = vadd.f32 0.0, %v2249
        %2251 = vmatprep.mubr.f32.mxu0 0.0
        %2252 = vmatmul.mubr.f32.gmra.mrb[0].mxu0 %v2143
        %v2253 = vpop.f32.mrb[0].mxu0
        %v2254 = vadd.f32 0.0, %v2253
        %v2255 = vpop.f32.mrb[0].mxu0
        %v2256 = vadd.f32 0.0, %v2255
        %2257 = vdwg.mxu0
        %v2259 = vsel %vm2120, %v2104, 0
        %v2262 = vsel %vm2120, %v2105, 0
        %v2265 = vsel %vm2120, %v2106, 0
        %v2268 = vsel %vm2120, %v2107, 0
        %v2271 = vsel %vm2120, %v2108, 0
        %v2274 = vsel %vm2120, %v2109, 0
        %v2277 = vsel %vm2120, %v2110, 0
        %v2280 = vsel %vm2120, %v2111, 0
        %2282 = vmatprep.subr.mxu0 %v655
        %2283 = vmatpush1.msra.mxu0 %v551
        %2284 = vmatprep.subr.mxu0 %v863
        %2285 = vmatpush1.msra.mxu0 %v759
        %2286 = vmatprep.subr.mxu0 %v1071
        %2287 = vmatpush1.msra.mxu0 %v967
        %2288 = vmatprep.subr.mxu0 %v1279
        %2289 = vmatpush1.msra.mxu0 %v1175
        %2290 = vmatprep.subr.mxu0 0.0
        %2291 = vmatpush1.msra.mxu0 0.0
        %2292 = vmatprep.subr.mxu0 0.0
        %2293 = vmatpush1.msra.mxu0 0.0
        %2294 = vmatprep.subr.mxu0 0.0
        %2295 = vmatpush1.msra.mxu0 0.0
        %2296 = vmatprep.subr.mxu0 0.0
        %2297 = vmatpush1.msra.mxu0 0.0
        %2298 = vmatprep.subr.mxu0 0.0
        %2299 = vmatpush1.msra.mxu0 0.0
        %2300 = vmatprep.subr.mxu0 0.0
        %2301 = vmatpush1.msra.mxu0 0.0
        %2302 = vmatprep.subr.mxu0 0.0
        %2303 = vmatpush1.msra.mxu0 0.0
        %2304 = vmatprep.subr.mxu0 0.0
        %2305 = vmatpush1.msra.mxu0 0.0
        %2306 = vmatprep.subr.mxu0 0.0
        %2307 = vmatpush1.msra.mxu0 0.0
        %2308 = vmatprep.subr.mxu0 0.0
        %2309 = vmatpush1.msra.mxu0 0.0
        %2310 = vmatprep.subr.mxu0 0.0
        %2311 = vmatpush1.msra.mxu0 0.0
        %2312 = vmatprep.subr.mxu0 0.0
        %2313 = vmatpush1.msra.mxu0 0.0
        %2314 = vmatprep.subr.mxu0 0.0
        %2315 = vmatpush1.msra.mxu0 0.0
        %2316 = vmatprep.subr.mxu0 0.0
        %2317 = vmatpush1.msra.mxu0 0.0
        %2318 = vmatprep.subr.mxu0 0.0
        %2319 = vmatpush1.msra.mxu0 0.0
        %2320 = vmatprep.subr.mxu0 0.0
        %2321 = vmatpush1.msra.mxu0 0.0
        %2322 = vmatprep.subr.mxu0 0.0
        %2323 = vmatpush1.msra.mxu0 0.0
        %2324 = vmatprep.subr.mxu0 0.0
        %2325 = vmatpush1.msra.mxu0 0.0
        %2326 = vmatprep.subr.mxu0 0.0
        %2327 = vmatpush1.msra.mxu0 0.0
        %2328 = vmatprep.subr.mxu0 0.0
        %2329 = vmatpush1.msra.mxu0 0.0
        %2330 = vmatprep.subr.mxu0 0.0
        %2331 = vmatpush1.msra.mxu0 0.0
        %2332 = vmatprep.subr.mxu0 0.0
        %2333 = vmatpush1.msra.mxu0 0.0
        %2334 = vmatprep.subr.mxu0 0.0
        %2335 = vmatpush1.msra.mxu0 0.0
        %2336 = vmatprep.subr.mxu0 0.0
        %2337 = vmatpush1.msra.mxu0 0.0
        %2338 = vmatprep.subr.mxu0 0.0
        %2339 = vmatpush1.msra.mxu0 0.0
        %2340 = vmatprep.subr.mxu0 0.0
        %2341 = vmatpush1.msra.mxu0 0.0
        %2342 = vmatprep.subr.mxu0 0.0
        %2343 = vmatpush1.msra.mxu0 0.0
        %2344 = vmatprep.subr.mxu0 0.0
        %2345 = vmatpush1.msra.mxu0 0.0
        %2346 = vmatprep.mubr.f32.mxu0 0.0
        %2347 = vmatmul.mubr.f32.gmra.mrb[0].mxu0 %v2259
        %v2348 = vpop.f32.mrb[0].mxu0
        %v2349 = vadd.f32 %v2212, %v2348
        %v2350 = vpop.f32.mrb[0].mxu0
        %v2351 = vadd.f32 %v2214, %v2350
        %2352 = vmatprep.mubr.f32.mxu0 0.0
        %2353 = vmatmul.mubr.f32.gmra.mrb[0].mxu0 %v2262
        %v2354 = vpop.f32.mrb[0].mxu0
        %v2355 = vadd.f32 %v2218, %v2354
        %v2356 = vpop.f32.mrb[0].mxu0
        %v2357 = vadd.f32 %v2220, %v2356
        %2358 = vmatprep.mubr.f32.mxu0 0.0
        %2359 = vmatmul.mubr.f32.gmra.mrb[0].mxu0 %v2265
        %v2360 = vpop.f32.mrb[0].mxu0
        %v2361 = vadd.f32 %v2224, %v2360
        %v2362 = vpop.f32.mrb[0].mxu0
        %v2363 = vadd.f32 %v2226, %v2362
        %2364 = vmatprep.mubr.f32.mxu0 0.0
        %2365 = vmatmul.mubr.f32.gmra.mrb[0].mxu0 %v2268
        %v2366 = vpop.f32.mrb[0].mxu0
        %v2367 = vadd.f32 %v2230, %v2366
        %v2368 = vpop.f32.mrb[0].mxu0
        %v2369 = vadd.f32 %v2232, %v2368
        %2370 = vmatprep.mubr.f32.mxu0 0.0
        %2371 = vmatmul.mubr.f32.gmra.mrb[0].mxu0 %v2271
        %v2372 = vpop.f32.mrb[0].mxu0
        %v2373 = vadd.f32 %v2236, %v2372
        %v2374 = vpop.f32.mrb[0].mxu0
        %v2375 = vadd.f32 %v2238, %v2374
        %2376 = vmatprep.mubr.f32.mxu0 0.0
        %2377 = vmatmul.mubr.f32.gmra.mrb[0].mxu0 %v2274
        %v2378 = vpop.f32.mrb[0].mxu0
        %v2379 = vadd.f32 %v2242, %v2378
        %v2380 = vpop.f32.mrb[0].mxu0
        %v2381 = vadd.f32 %v2244, %v2380
        %2382 = vmatprep.mubr.f32.mxu0 0.0
        %2383 = vmatmul.mubr.f32.gmra.mrb[0].mxu0 %v2277
        %v2384 = vpop.f32.mrb[0].mxu0
        %v2385 = vadd.f32 %v2248, %v2384
        %v2386 = vpop.f32.mrb[0].mxu0
        %v2387 = vadd.f32 %v2250, %v2386
        %2388 = vmatprep.mubr.f32.mxu0 0.0
        %2389 = vmatmul.mubr.f32.gmra.mrb[0].mxu0 %v2280
        %v2390 = vpop.f32.mrb[0].mxu0
        %v2391 = vadd.f32 %v2254, %v2390
        %v2392 = vpop.f32.mrb[0].mxu0
        %v2393 = vadd.f32 %v2256, %v2392
        %2394 = vdwg.mxu0
        %v2395 = vld [vmem:[%s4] sm:$0xff]
        %v2396 = vld [vmem:[%s4 + $0x8] sm:$0xff]
        %v2397 = vld [vmem:[%s4 + $0x10] sm:$0xff]
        %v2398 = vld [vmem:[%s4 + $0x18] sm:$0xff]
        %v2399 = vld [vmem:[%s4 + $0x20] sm:$0xff]
        %v2400 = vld [vmem:[%s4 + $0x28] sm:$0xff]
        %v2401 = vld [vmem:[%s4 + $0x30] sm:$0xff]
        %v2402 = vld [vmem:[%s4 + $0x38] sm:$0xff]
        %2404 = vset.pattern.permute.xlu0 0
        %2405 = vperm.xlu0 %2404, %v2395
        %v2406 = vpop.permute.xlu0 %2405
        %2409 = vset.pattern.permute.xlu0 0
        %2410 = vperm.xlu0 %2409, %v2396
        %v2411 = vpop.permute.xlu0 %2410
        %2414 = vset.pattern.permute.xlu0 0
        %2415 = vperm.xlu0 %2414, %v2397
        %v2416 = vpop.permute.xlu0 %2415
        %2419 = vset.pattern.permute.xlu0 0
        %2420 = vperm.xlu0 %2419, %v2398
        %v2421 = vpop.permute.xlu0 %2420
        %2424 = vset.pattern.permute.xlu0 0
        %2425 = vperm.xlu0 %2424, %v2399
        %v2426 = vpop.permute.xlu0 %2425
        %2429 = vset.pattern.permute.xlu0 0
        %2430 = vperm.xlu0 %2429, %v2400
        %v2431 = vpop.permute.xlu0 %2430
        %2434 = vset.pattern.permute.xlu0 0
        %2435 = vperm.xlu0 %2434, %v2401
        %v2436 = vpop.permute.xlu0 %2435
        %2439 = vset.pattern.permute.xlu0 0
        %2440 = vperm.xlu0 %2439, %v2402
        %v2441 = vpop.permute.xlu0 %2440
        %v2443 = vadd.f32 %v2349, %v2406
        %v2444 = vadd.f32 %v2351, %v2406
        %v2445 = vadd.f32 %v2355, %v2411
        %v2446 = vadd.f32 %v2357, %v2411
        %v2447 = vadd.f32 %v2361, %v2416
        %v2448 = vadd.f32 %v2363, %v2416
        %v2449 = vadd.f32 %v2367, %v2421
        %v2450 = vadd.f32 %v2369, %v2421
        %v2451 = vadd.f32 %v2373, %v2426
        %v2452 = vadd.f32 %v2375, %v2426
        %v2453 = vadd.f32 %v2379, %v2431
        %v2454 = vadd.f32 %v2381, %v2431
        %v2455 = vadd.f32 %v2385, %v2436
        %v2456 = vadd.f32 %v2387, %v2436
        %v2457 = vadd.f32 %v2391, %v2441
        %v2458 = vadd.f32 %v2393, %v2441
        %v2459 = vtanh.pop %v2443
        %v2460 = vtanh.pop %v2444
        %v2461 = vtanh.pop %v2445
        %v2462 = vtanh.pop %v2446
        %v2463 = vtanh.pop %v2447
        %v2464 = vtanh.pop %v2448
        %v2465 = vtanh.pop %v2449
        %v2466 = vtanh.pop %v2450
        %v2467 = vtanh.pop %v2451
        %v2468 = vtanh.pop %v2452
        %v2469 = vtanh.pop %v2453
        %v2470 = vtanh.pop %v2454
        %v2471 = vtanh.pop %v2455
        %v2472 = vtanh.pop %v2456
        %v2473 = vtanh.pop %v2457
        %v2474 = vtanh.pop %v2458
        %v2475 = vld [vmem:[%s5] sm:$0xff]
        %v2476 = vld [vmem:[%s5 + $0x8] sm:$0xff]
        %v2477 = vld [vmem:[%s5 + $0x10] sm:$0xff]
        %v2478 = vld [vmem:[%s5 + $0x18] sm:$0xff]
        %v2479 = vld [vmem:[%s5 + $0x20] sm:$0xff]
        %v2480 = vld [vmem:[%s5 + $0x28] sm:$0xff]
        %v2481 = vld [vmem:[%s5 + $0x30] sm:$0xff]
        %v2482 = vld [vmem:[%s5 + $0x38] sm:$0xff]
        %v2483 = vld [vmem:[%s6] sm:$0xff]
        %v2484 = vld [vmem:[%s6 + $0x8] sm:$0xff]
        %v2485 = vld [vmem:[%s6 + $0x10] sm:$0xff]
        %v2486 = vld [vmem:[%s6 + $0x18] sm:$0xff]
        %v2487 = vld [vmem:[%s6 + $0x20] sm:$0xff]
        %v2488 = vld [vmem:[%s6 + $0x28] sm:$0xff]
        %v2489 = vld [vmem:[%s6 + $0x30] sm:$0xff]
        %v2490 = vld [vmem:[%s6 + $0x38] sm:$0xff]
        %2492 = vset.pattern.permute.xlu0 0
        %2493 = vperm.xlu0 %2492, %v2483
        %v2494 = vpop.permute.xlu0 %2493
        %2497 = vset.pattern.permute.xlu0 0
        %2498 = vperm.xlu0 %2497, %v2484
        %v2499 = vpop.permute.xlu0 %2498
        %2502 = vset.pattern.permute.xlu0 0
        %2503 = vperm.xlu0 %2502, %v2485
        %v2504 = vpop.permute.xlu0 %2503
        %2507 = vset.pattern.permute.xlu0 0
        %2508 = vperm.xlu0 %2507, %v2486
        %v2509 = vpop.permute.xlu0 %2508
        %2512 = vset.pattern.permute.xlu0 0
        %2513 = vperm.xlu0 %2512, %v2487
        %v2514 = vpop.permute.xlu0 %2513
        %2517 = vset.pattern.permute.xlu0 0
        %2518 = vperm.xlu0 %2517, %v2488
        %v2519 = vpop.permute.xlu0 %2518
        %2522 = vset.pattern.permute.xlu0 0
        %2523 = vperm.xlu0 %2522, %v2489
        %v2524 = vpop.permute.xlu0 %2523
        %2527 = vset.pattern.permute.xlu0 0
        %2528 = vperm.xlu0 %2527, %v2490
        %v2529 = vpop.permute.xlu0 %2528
        %vm2531 = vcmask 523264
        %v2533 = vsel %vm2531, %v2475, 0
        %v2536 = vsel %vm2531, %v2476, 0
        %v2539 = vsel %vm2531, %v2477, 0
        %v2542 = vsel %vm2531, %v2478, 0
        %v2545 = vsel %vm2531, %v2479, 0
        %v2548 = vsel %vm2531, %v2480, 0
        %v2551 = vsel %vm2531, %v2481, 0
        %v2554 = vsel %vm2531, %v2482, 0
        %2556 = vmatprep.subr.mxu0 %v2460
        %2557 = vmatpush1.msra.mxu0 %v2459
        %2558 = vmatprep.subr.mxu0 %v2462
        %2559 = vmatpush1.msra.mxu0 %v2461
        %2560 = vmatprep.subr.mxu0 %v2464
        %2561 = vmatpush1.msra.mxu0 %v2463
        %2562 = vmatprep.subr.mxu0 %v2466
        %2563 = vmatpush1.msra.mxu0 %v2465
        %2564 = vmatprep.subr.mxu0 %v2468
        %2565 = vmatpush1.msra.mxu0 %v2467
        %2566 = vmatprep.subr.mxu0 %v2470
        %2567 = vmatpush1.msra.mxu0 %v2469
        %2568 = vmatprep.subr.mxu0 %v2472
        %2569 = vmatpush1.msra.mxu0 %v2471
        %2570 = vmatprep.subr.mxu0 %v2474
        %2571 = vmatpush1.msra.mxu0 %v2473
        %2572 = vmatprep.subr.mxu0 0.0
        %2573 = vmatpush1.msra.mxu0 0.0
        %2574 = vmatprep.subr.mxu0 0.0
        %2575 = vmatpush1.msra.mxu0 0.0
        %2576 = vmatprep.subr.mxu0 0.0
        %2577 = vmatpush1.msra.mxu0 0.0
        %2578 = vmatprep.subr.mxu0 0.0
        %2579 = vmatpush1.msra.mxu0 0.0
        %2580 = vmatprep.subr.mxu0 0.0
        %2581 = vmatpush1.msra.mxu0 0.0
        %2582 = vmatprep.subr.mxu0 0.0
        %2583 = vmatpush1.msra.mxu0 0.0
        %2584 = vmatprep.subr.mxu0 0.0
        %2585 = vmatpush1.msra.mxu0 0.0
        %2586 = vmatprep.subr.mxu0 0.0
        %2587 = vmatpush1.msra.mxu0 0.0
        %2588 = vmatprep.subr.mxu0 0.0
        %2589 = vmatpush1.msra.mxu0 0.0
        %2590 = vmatprep.subr.mxu0 0.0
        %2591 = vmatpush1.msra.mxu0 0.0
        %2592 = vmatprep.subr.mxu0 0.0
        %2593 = vmatpush1.msra.mxu0 0.0
        %2594 = vmatprep.subr.mxu0 0.0
        %2595 = vmatpush1.msra.mxu0 0.0
        %2596 = vmatprep.subr.mxu0 0.0
        %2597 = vmatpush1.msra.mxu0 0.0
        %2598 = vmatprep.subr.mxu0 0.0
        %2599 = vmatpush1.msra.mxu0 0.0
        %2600 = vmatprep.subr.mxu0 0.0
        %2601 = vmatpush1.msra.mxu0 0.0
        %2602 = vmatprep.subr.mxu0 0.0
        %2603 = vmatpush1.msra.mxu0 0.0
        %2604 = vmatprep.subr.mxu0 0.0
        %2605 = vmatpush1.msra.mxu0 0.0
        %2606 = vmatprep.subr.mxu0 0.0
        %2607 = vmatpush1.msra.mxu0 0.0
        %2608 = vmatprep.subr.mxu0 0.0
        %2609 = vmatpush1.msra.mxu0 0.0
        %2610 = vmatprep.subr.mxu0 0.0
        %2611 = vmatpush1.msra.mxu0 0.0
        %2612 = vmatprep.subr.mxu0 0.0
        %2613 = vmatpush1.msra.mxu0 0.0
        %2614 = vmatprep.subr.mxu0 0.0
        %2615 = vmatpush1.msra.mxu0 0.0
        %2616 = vmatprep.subr.mxu0 0.0
        %2617 = vmatpush1.msra.mxu0 0.0
        %2618 = vmatprep.subr.mxu0 0.0
        %2619 = vmatpush1.msra.mxu0 0.0
        %2620 = vmatprep.mubr.f32.mxu0 0.0
        %2621 = vmatmul.mubr.f32.gmra.mrb[0].mxu0 %v2533
        %v2622 = vpop.f32.mrb[0].mxu0
        %v2623 = vadd.f32 %v2494, %v2622
        %v2624 = vpop.f32.mrb[0].mxu0
        %v2625 = vadd.f32 %v2494, %v2624
        %2626 = vmatprep.mubr.f32.mxu0 0.0
        %2627 = vmatmul.mubr.f32.gmra.mrb[0].mxu0 %v2536
        %v2628 = vpop.f32.mrb[0].mxu0
        %v2629 = vadd.f32 %v2499, %v2628
        %v2630 = vpop.f32.mrb[0].mxu0
        %v2631 = vadd.f32 %v2499, %v2630
        %2632 = vmatprep.mubr.f32.mxu0 0.0
        %2633 = vmatmul.mubr.f32.gmra.mrb[0].mxu0 %v2539
        %v2634 = vpop.f32.mrb[0].mxu0
        %v2635 = vadd.f32 %v2504, %v2634
        %v2636 = vpop.f32.mrb[0].mxu0
        %v2637 = vadd.f32 %v2504, %v2636
        %2638 = vmatprep.mubr.f32.mxu0 0.0
        %2639 = vmatmul.mubr.f32.gmra.mrb[0].mxu0 %v2542
        %v2640 = vpop.f32.mrb[0].mxu0
        %v2641 = vadd.f32 %v2509, %v2640
        %v2642 = vpop.f32.mrb[0].mxu0
        %v2643 = vadd.f32 %v2509, %v2642
        %2644 = vmatprep.mubr.f32.mxu0 0.0
        %2645 = vmatmul.mubr.f32.gmra.mrb[0].mxu0 %v2545
        %v2646 = vpop.f32.mrb[0].mxu0
        %v2647 = vadd.f32 %v2514, %v2646
        %v2648 = vpop.f32.mrb[0].mxu0
        %v2649 = vadd.f32 %v2514, %v2648
        %2650 = vmatprep.mubr.f32.mxu0 0.0
        %2651 = vmatmul.mubr.f32.gmra.mrb[0].mxu0 %v2548
        %v2652 = vpop.f32.mrb[0].mxu0
        %v2653 = vadd.f32 %v2519, %v2652
        %v2654 = vpop.f32.mrb[0].mxu0
        %v2655 = vadd.f32 %v2519, %v2654
        %2656 = vmatprep.mubr.f32.mxu0 0.0
        %2657 = vmatmul.mubr.f32.gmra.mrb[0].mxu0 %v2551
        %v2658 = vpop.f32.mrb[0].mxu0
        %v2659 = vadd.f32 %v2524, %v2658
        %v2660 = vpop.f32.mrb[0].mxu0
        %v2661 = vadd.f32 %v2524, %v2660
        %2662 = vmatprep.mubr.f32.mxu0 0.0
        %2663 = vmatmul.mubr.f32.gmra.mrb[0].mxu0 %v2554
        %v2664 = vpop.f32.mrb[0].mxu0
        %v2665 = vadd.f32 %v2529, %v2664
        %v2666 = vpop.f32.mrb[0].mxu0
        %v2667 = vadd.f32 %v2529, %v2666
        %2668 = vdwg.mxu0
        %v2669 = vld [vmem:[%s7] sm:$0xf]
        %v2670 = vld [vmem:[%s8] sm:$0xf]
        %2672 = vset.pattern.permute.xlu0 0
        %2673 = vperm.xlu0 %2672, %v2670
        %v2674 = vpop.permute.xlu0 %2673
        %v2677 = vsel %vm2531, %v2669, 0
        %2679 = vmatprep.subr.mxu0 %v2625
        %2680 = vmatpush1.msra.mxu0 %v2623
        %2681 = vmatprep.subr.mxu0 %v2631
        %2682 = vmatpush1.msra.mxu0 %v2629
        %2683 = vmatprep.subr.mxu0 %v2637
        %2684 = vmatpush1.msra.mxu0 %v2635
        %2685 = vmatprep.subr.mxu0 %v2643
        %2686 = vmatpush1.msra.mxu0 %v2641
        %2687 = vmatprep.subr.mxu0 %v2649
        %2688 = vmatpush1.msra.mxu0 %v2647
        %2689 = vmatprep.subr.mxu0 %v2655
        %2690 = vmatpush1.msra.mxu0 %v2653
        %2691 = vmatprep.subr.mxu0 %v2661
        %2692 = vmatpush1.msra.mxu0 %v2659
        %2693 = vmatprep.subr.mxu0 %v2667
        %2694 = vmatpush1.msra.mxu0 %v2665
        %2695 = vmatprep.subr.mxu0 0.0
        %2696 = vmatpush1.msra.mxu0 0.0
        %2697 = vmatprep.subr.mxu0 0.0
        %2698 = vmatpush1.msra.mxu0 0.0
        %2699 = vmatprep.subr.mxu0 0.0
        %2700 = vmatpush1.msra.mxu0 0.0
        %2701 = vmatprep.subr.mxu0 0.0
        %2702 = vmatpush1.msra.mxu0 0.0
        %2703 = vmatprep.subr.mxu0 0.0
        %2704 = vmatpush1.msra.mxu0 0.0
        %2705 = vmatprep.subr.mxu0 0.0
        %2706 = vmatpush1.msra.mxu0 0.0
        %2707 = vmatprep.subr.mxu0 0.0
        %2708 = vmatpush1.msra.mxu0 0.0
        %2709 = vmatprep.subr.mxu0 0.0
        %2710 = vmatpush1.msra.mxu0 0.0
        %2711 = vmatprep.subr.mxu0 0.0
        %2712 = vmatpush1.msra.mxu0 0.0
        %2713 = vmatprep.subr.mxu0 0.0
        %2714 = vmatpush1.msra.mxu0 0.0
        %2715 = vmatprep.subr.mxu0 0.0
        %2716 = vmatpush1.msra.mxu0 0.0
        %2717 = vmatprep.subr.mxu0 0.0
        %2718 = vmatpush1.msra.mxu0 0.0
        %2719 = vmatprep.subr.mxu0 0.0
        %2720 = vmatpush1.msra.mxu0 0.0
        %2721 = vmatprep.subr.mxu0 0.0
        %2722 = vmatpush1.msra.mxu0 0.0
        %2723 = vmatprep.subr.mxu0 0.0
        %2724 = vmatpush1.msra.mxu0 0.0
        %2725 = vmatprep.subr.mxu0 0.0
        %2726 = vmatpush1.msra.mxu0 0.0
        %2727 = vmatprep.subr.mxu0 0.0
        %2728 = vmatpush1.msra.mxu0 0.0
        %2729 = vmatprep.subr.mxu0 0.0
        %2730 = vmatpush1.msra.mxu0 0.0
        %2731 = vmatprep.subr.mxu0 0.0
        %2732 = vmatpush1.msra.mxu0 0.0
        %2733 = vmatprep.subr.mxu0 0.0
        %2734 = vmatpush1.msra.mxu0 0.0
        %2735 = vmatprep.subr.mxu0 0.0
        %2736 = vmatpush1.msra.mxu0 0.0
        %2737 = vmatprep.subr.mxu0 0.0
        %2738 = vmatpush1.msra.mxu0 0.0
        %2739 = vmatprep.subr.mxu0 0.0
        %2740 = vmatpush1.msra.mxu0 0.0
        %2741 = vmatprep.subr.mxu0 0.0
        %2742 = vmatpush1.msra.mxu0 0.0
        %2743 = vmatprep.mubr.f32.mxu0 0.0
        %2744 = vmatmul.mubr.f32.gmra.mrb[0].mxu0 %v2677
        %v2745 = vpop.f32.mrb[0].mxu0
        %v2746 = vadd.f32 %v2674, %v2745
        %v2747 = vpop.f32.mrb[0].mxu0
        %v2748 = vadd.f32 %v2674, %v2747
        %2749 = vdwg.mxu0
        %v2752 = vcombine.low %v2746, %v2748
        %2754 = vst [vmem:[%s326] sm:$0xff] %v2752
        %s2755 = sand.u32 %s225, 1
        %s2756 = scalar_lea.sflag [#allocation3], %s2755
        %s2757 = sand.u32 %s225, 1
        %s2758 = smul.addr %s2757, 8
        %s2759 = scalar_lea.vmem [#allocation2], %s2758
        // Predicated region
        $region57: #{tpu_custom_call.1} parent=55 // pred_check
          %p2760 = pneg %p235
        $region58: #{tpu_custom_call.1} parent=55 // pred_check_branch
          %2762 = sbr.rel (%p2760) target = $region60
        $region59: #{tpu_custom_call.1} parent=55 // pred_region
          %s2763 = smul.u32 2, %s23
          %s2765 = ssub.s32 128, 128
          %2766 = vsyncadd %s2756, %s2765
          %s2767 = smul.addr %s2763, 64
          %s2768 = scalar_lea.hbm %s9, %s2767
          %s2770 = sshll.u32 %s2759, 4
          %s2771 = int_to_ptr.vmem [resolvable:$true] %s2770
          %2773 = dma.vmem_to_hbm [thread:$0]  %s2771, 128, %s2768, %s2756
        $region60: #{tpu_custom_call.1} parent=55 // pred_fallthru
          _
      $region56: #{tpu_custom_call.1} parent=5 // pred_fallthru
        _
      %p2774 = scmp.le.s32.totalorder 2, %s18
      // Predicated region
      $region61: #{tpu_custom_call.1} parent=5 // pred_check
        %p2775 = pneg %p2774
      $region62: #{tpu_custom_call.1} parent=5 // pred_check_branch
        %2777 = sbr.rel (%p2775) target = $region64
      $region63: #{tpu_custom_call.1} parent=5 // pred_region
        %s2778 = ssub.s32 %s18, 2
        // Predicated region
        $region65: #{tpu_custom_call.1} parent=63 // pred_check
          %p2779 = pneg %p241
        $region66: #{tpu_custom_call.1} parent=63 // pred_check_branch
          %2781 = sbr.rel (%p2779) target = $region68
        $region67: #{tpu_custom_call.1} parent=63 // pred_region
          %s2782 = sand.u32 %s226, 1
          %s2783 = scalar_lea.sflag [#allocation3], %s2782
          %s2784 = sand.u32 %s226, 1
          %s2785 = smul.addr %s2784, 8
          %s2786 = scalar_lea.vmem [#allocation2], %s2785
          %2787 = dma.done %s2783, 128
        $region68: #{tpu_custom_call.1} parent=63 // pred_fallthru
          _
      $region64: #{tpu_custom_call.1} parent=5 // pred_fallthru
        _
    $region6: #{tpu_custom_call.1} parent=1 // loop_footer
      %s22 = sadd.s32 1, %s18
    $region7: #{tpu_custom_call.1} parent=1 // loop_footer_branch
      %17 = sbr.rel target = $region3
    $region8: #{tpu_custom_call.1} parent=1 // loop_exit
      _
    %2788 = vsyncpa [#allocation3], 1
    %s2789 = scalar_lea.sflag [#allocation3], 1
    %2790 = vsyncpa %s2789, 1

</llo_original>
